<compile_context>
chip_gen: v7x
topology: tpu7x:2x2x1
jax: 0.10.0
libtpu: 0.0.40
codegen_flags: <defaults>
</compile_context>

<pallas_src>
import functools

import jax
import jax.numpy as jnp
from jax.experimental import pallas as pl
from jax.experimental.pallas import tpu as pltpu


def mha_kernel(x_ref, a_ref, bm_ref, bias_ref, out_ref, *, n_head):
    """One batch element: x (1,T,C) bf16, A/Bm (H,C,C) bf16, bias (1,C) f32 -> out (1,T,C) bf16."""
    x = x_ref[0]                                             # (T, C) bf16
    T, C = x.shape
    H = n_head

    # Hoisted broadcast (JAX does not CSE broadcast_in_dim inside loops/uses).
    xb = jnp.broadcast_to(x, (H, T, C))                      # (H, T, C) bf16

    # scores: s_h = (x @ A_h) @ x^T,   A_h already contains the C**-0.5 scale.
    xa = jnp.einsum('htc,hcd->htd', xb, a_ref[...],
                    preferred_element_type=jnp.float32)      # (H, T, C) f32, 128-deep
    s = jnp.einsum('htd,hsd->hts', xa.astype(jnp.bfloat16), xb,
                   preferred_element_type=jnp.float32)       # (H, T, T) f32, 128-deep

    # Batched numerically-stable softmax in f32; reciprocal on the EUP slot.
    s = s - jnp.max(s, axis=-1, keepdims=True)
    p = jnp.exp(s)
    p = p * pl.reciprocal(jnp.sum(p, axis=-1, keepdims=True), approx=True)

    # Head output folded directly into the output projection:
    #   out = sum_h (p_h @ x) @ (Wv_h @ Wo_h) + bias   (no concat, 128-wide outputs)
    pv = jnp.einsum('hts,hsc->htc', p.astype(jnp.bfloat16), xb,
                    preferred_element_type=jnp.float32)      # (H, T, C) f32
    oh = jnp.einsum('htc,hcd->htd', pv.astype(jnp.bfloat16), bm_ref[...],
                    preferred_element_type=jnp.float32)      # (H, T, C) f32, 128-deep
    acc = jnp.sum(oh, axis=0) + bias_ref[...].astype(jnp.float32)   # (T, C) f32

    out_ref[0] = acc.astype(out_ref.dtype)


def prepare_mha_params(wq, wk, wv, wo, bo, n_head):
    """One-time (init-time) weight fusion + bf16 cast -- hoisted out of the forward path."""
    C = wq.shape[0]
    d_k = C // n_head
    scale = float(C) ** -0.5          # PyTorch Head scales by n_embd (=C), not d_k.

    wq3 = wq.reshape(C, n_head, d_k).transpose(1, 0, 2)      # (H, C, dk): Wq_h
    wk3 = wk.reshape(C, n_head, d_k).transpose(1, 0, 2)      # (H, C, dk): Wk_h
    wv3 = wv.reshape(C, n_head, d_k).transpose(1, 0, 2)      # (H, C, dk): Wv_h
    wo3 = wo.reshape(n_head, d_k, C)                         # (H, dk, C): Wo rows of head h

    # A_h = scale * Wq_h @ Wk_h^T  and  B_h = Wv_h @ Wo_h   (both C x C, computed in f32).
    a = (scale * jnp.einsum('hcd,hed->hce', wq3, wk3)).astype(jnp.bfloat16)   # (H, C, C)
    bm = jnp.einsum('hcd,hde->hce', wv3, wo3).astype(jnp.bfloat16)            # (H, C, C)
    return a, bm, bo.astype(jnp.float32)


def multi_head_attention_pallas(x, a, bm, bo, n_head):
    B, T, C = x.shape
    kernel = functools.partial(mha_kernel, n_head=n_head)
    return pl.pallas_call(
        kernel,
        out_shape=jax.ShapeDtypeStruct((B, T, C), jnp.bfloat16),
        grid=(B,),
        in_specs=[
            pl.BlockSpec((1, T, C), lambda b: (b, 0, 0)),          # x   (per batch element)
            pl.BlockSpec((n_head, C, C), lambda b: (0, 0, 0)),     # A   (resident, constant index_map)
            pl.BlockSpec((n_head, C, C), lambda b: (0, 0, 0)),     # Bm  (resident)
            pl.BlockSpec((1, C), lambda b: (0, 0)),                # bias (resident)
        ],
        out_specs=pl.BlockSpec((1, T, C), lambda b: (b, 0, 0)),
        compiler_params=pltpu.CompilerParams(
            dimension_semantics=("parallel",)),                    # v7x: batch split across 2 TCs
    )(x.astype(jnp.bfloat16), a, bm, bo)


# ---------------------------- pure-JAX reference ----------------------------
def mha_ref(x, wq, wk, wv, wo, bo, n_head):
    B, T, C = x.shape
    d_k = C // n_head
    q, k, v = x @ wq, x @ wk, x @ wv
    scale = C ** (-0.5)
    outs = []
    for h in range(n_head):
        sl = slice(h * d_k, (h + 1) * d_k)
        wei = jnp.einsum("btd,bsd->bts", q[..., sl], k[..., sl]) * scale
        wei = jax.nn.softmax(wei, axis=-1)
        outs.append(jnp.einsum("bts,bsd->btd", wei, v[..., sl]))
    att = jnp.concatenate(outs, axis=-1)
    return att @ wo + bo


if __name__ == "__main__":
    B, T = 2, 16
    n_embd, n_head = 128, 4          # d_k = 32; C = 128 keeps every matmul 128-deep / 128-wide

    key = jax.random.PRNGKey(0)
    kx, kq, kk, kv, ko, kb = jax.random.split(key, 6)
    w_scale = n_embd ** -0.5
    x = jax.random.normal(kx, (B, T, n_embd), dtype=jnp.float32)
    wq = (w_scale * jax.random.normal(kq, (n_embd, n_embd))).astype(jnp.float32)
    wk = (w_scale * jax.random.normal(kk, (n_embd, n_embd))).astype(jnp.float32)
    wv = (w_scale * jax.random.normal(kv, (n_embd, n_embd))).astype(jnp.float32)
    wo = (w_scale * jax.random.normal(ko, (n_embd, n_embd))).astype(jnp.float32)
    bo = (0.1 * jax.random.normal(kb, (1, n_embd))).astype(jnp.float32)

    # One-time weight fusion (hoisted out of the per-call path).
    a, bm, bias = prepare_mha_params(wq, wk, wv, wo, bo, n_head)

    out = multi_head_attention_pallas(x, a, bm, bias, n_head)
    out = jax.block_until_ready(out)

    ref = mha_ref(x, wq, wk, wv, wo, bo, n_head)
    assert out.shape == (B, T, n_embd)
    out_f32 = out.astype(jnp.float32)
    # Tolerance accounts for bf16 MXU operands / fused bf16 weights / bf16 output / approx recip.
    assert jnp.allclose(out_f32, ref, atol=5e-2, rtol=5e-2), (
        f"mismatch vs reference: max abs diff = {jnp.max(jnp.abs(out_f32 - ref))}")
    print("KERNEL_OK")
</pallas_src>

<mosaic_0001>
module attributes {stable_mosaic.version = 11 : i64} {
  func.func @mha_kernel(%arg0: i32, %arg1: memref<1x16x128xbf16, #tpu.memory_space<vmem>>, %arg2: memref<4x128x128xbf16, #tpu.memory_space<vmem>>, %arg3: memref<4x128x128xbf16, #tpu.memory_space<vmem>>, %arg4: memref<1x128xf32, #tpu.memory_space<vmem>>, %arg5: memref<1x16x128xbf16, #tpu.memory_space<vmem>>) attributes {dimension_semantics = [#tpu.dimension_semantics<parallel>], iteration_bounds = array<i64: 2>, scalar_prefetch = 0 : i64, scratch_operands = 0 : i64, tpu.core_type = #tpu.core_type<tc>, window_params = [{transform_indices = @transform_0, window_bounds = array<i64: 1, 16, 128>}, {pipeline_mode = #tpu.pipeline_mode<synchronous>, transform_indices = @transform_1, window_bounds = array<i64: 4, 128, 128>}, {pipeline_mode = #tpu.pipeline_mode<synchronous>, transform_indices = @transform_2, window_bounds = array<i64: 4, 128, 128>}, {pipeline_mode = #tpu.pipeline_mode<synchronous>, transform_indices = @transform_3, window_bounds = array<i64: 1, 128>}, {transform_indices = @transform_4, window_bounds = array<i64: 1, 16, 128>}]} {
    %c0 = arith.constant 0 : index
    %c0_0 = arith.constant 0 : index
    %c0_1 = arith.constant 0 : index
    %0 = vector.load %arg1[%c0, %c0_0, %c0_1] : memref<1x16x128xbf16, #tpu.memory_space<vmem>>, vector<1x16x128xbf16>
    %1 = vector.shape_cast %0 : vector<1x16x128xbf16> to vector<16x128xbf16>
    %2 = vector.shape_cast %1 : vector<16x128xbf16> to vector<1x16x128xbf16>
    %3 = vector.broadcast %2 : vector<1x16x128xbf16> to vector<4x16x128xbf16>
    %c0_2 = arith.constant 0 : index
    %c0_3 = arith.constant 0 : index
    %c0_4 = arith.constant 0 : index
    %4 = vector.load %arg2[%c0_2, %c0_3, %c0_4] : memref<4x128x128xbf16, #tpu.memory_space<vmem>>, vector<4x128x128xbf16>
    "tpu.trace_start"() <{level = 10 : i32, message = "htc,hcd->htd"}> : () -> ()
    %cst = arith.constant dense<0.000000e+00> : vector<4x16x128xf32>
    %5 = tpu.matmul %3, %4, %cst {dimension_numbers = #tpu.dot_dimension_numbers<[2], [1], [1], [2], [0, 0, 0, 1, 1, 2], [0], [0]>} : vector<4x16x128xbf16>, vector<4x128x128xbf16>, vector<4x16x128xf32> -> vector<4x16x128xf32>
    "tpu.trace_stop"() : () -> ()
    %6 = arith.truncf %5 : vector<4x16x128xf32> to vector<4x16x128xbf16>
    "tpu.trace_start"() <{level = 10 : i32, message = "htd,hsd->hts"}> : () -> ()
    %cst_5 = arith.constant dense<0.000000e+00> : vector<4x16x16xf32>
    %7 = tpu.matmul %6, %3, %cst_5 {dimension_numbers = #tpu.dot_dimension_numbers<[2], [2], [1], [1], [0, 0, 0, 1, 1, 1], [0], [0]>} : vector<4x16x128xbf16>, vector<4x16x128xbf16>, vector<4x16x16xf32> -> vector<4x16x16xf32>
    "tpu.trace_stop"() : () -> ()
    %cst_6 = arith.constant dense<0xFF800000> : vector<4x16xf32>
    %8 = vector.multi_reduction <maximumf>, %7, %cst_6 [2] : vector<4x16x16xf32> to vector<4x16xf32>
    %9 = vector.shape_cast %8 : vector<4x16xf32> to vector<4x16x1xf32>
    %10 = vector.broadcast %9 : vector<4x16x1xf32> to vector<4x16x16xf32>
    %11 = arith.subf %7, %10 : vector<4x16x16xf32>
    %12 = math.exp %11 : vector<4x16x16xf32>
    %cst_7 = arith.constant dense<0.000000e+00> : vector<4x16xf32>
    %13 = vector.multi_reduction <add>, %12, %cst_7 [2] : vector<4x16x16xf32> to vector<4x16xf32>
    %14 = vector.shape_cast %13 : vector<4x16xf32> to vector<4x16x1xf32>
    %15 = tpu.reciprocal %14 {approx = true} : vector<4x16x1xf32> -> vector<4x16x1xf32>
    %16 = vector.broadcast %15 : vector<4x16x1xf32> to vector<4x16x16xf32>
    %17 = arith.mulf %12, %16 : vector<4x16x16xf32>
    %18 = arith.truncf %17 : vector<4x16x16xf32> to vector<4x16x16xbf16>
    "tpu.trace_start"() <{level = 10 : i32, message = "hts,hsc->htc"}> : () -> ()
    %cst_8 = arith.constant dense<0.000000e+00> : vector<4x16x128xf32>
    %19 = tpu.matmul %18, %3, %cst_8 {dimension_numbers = #tpu.dot_dimension_numbers<[2], [1], [1], [2], [0, 0, 0, 1, 1, 2], [0], [0]>} : vector<4x16x16xbf16>, vector<4x16x128xbf16>, vector<4x16x128xf32> -> vector<4x16x128xf32>
    "tpu.trace_stop"() : () -> ()
    %20 = arith.truncf %19 : vector<4x16x128xf32> to vector<4x16x128xbf16>
    %c0_9 = arith.constant 0 : index
    %c0_10 = arith.constant 0 : index
    %c0_11 = arith.constant 0 : index
    %21 = vector.load %arg3[%c0_9, %c0_10, %c0_11] : memref<4x128x128xbf16, #tpu.memory_space<vmem>>, vector<4x128x128xbf16>
    "tpu.trace_start"() <{level = 10 : i32, message = "htc,hcd->htd"}> : () -> ()
    %cst_12 = arith.constant dense<0.000000e+00> : vector<4x16x128xf32>
    %22 = tpu.matmul %20, %21, %cst_12 {dimension_numbers = #tpu.dot_dimension_numbers<[2], [1], [1], [2], [0, 0, 0, 1, 1, 2], [0], [0]>} : vector<4x16x128xbf16>, vector<4x128x128xbf16>, vector<4x16x128xf32> -> vector<4x16x128xf32>
    "tpu.trace_stop"() : () -> ()
    %cst_13 = arith.constant dense<0.000000e+00> : vector<16x128xf32>
    %23 = vector.multi_reduction <add>, %22, %cst_13 [0] : vector<4x16x128xf32> to vector<16x128xf32>
    %c0_14 = arith.constant 0 : index
    %c0_15 = arith.constant 0 : index
    %24 = vector.load %arg4[%c0_14, %c0_15] : memref<1x128xf32, #tpu.memory_space<vmem>>, vector<1x128xf32>
    %25 = vector.broadcast %24 : vector<1x128xf32> to vector<16x128xf32>
    %26 = arith.addf %23, %25 : vector<16x128xf32>
    %27 = arith.truncf %26 : vector<16x128xf32> to vector<16x128xbf16>
    %c0_16 = arith.constant 0 : index
    %c0_17 = arith.constant 0 : index
    %c0_18 = arith.constant 0 : index
    %28 = vector.load %arg5[%c0_16, %c0_17, %c0_18] : memref<1x16x128xbf16, #tpu.memory_space<vmem>>, vector<1x16x128xbf16>
    %29 = vector.shape_cast %28 : vector<1x16x128xbf16> to vector<16x128xbf16>
    %30 = vector.shape_cast %27 : vector<16x128xbf16> to vector<1x16x128xbf16>
    tpu.vector_store %arg5[%c0_16, %c0_17, %c0_18], %30 {strides = array<i32>} : memref<1x16x128xbf16, #tpu.memory_space<vmem>>, vector<1x16x128xbf16>,
    return
  }
  func.func @transform_0(%arg0: i32) -> (i32, i32, i32) {
    %c0_i32 = arith.constant 0 : i32
    %c0_i32_0 = arith.constant 0 : i32
    %c0_i32_1 = arith.constant 0 : i32
    return %arg0, %c0_i32, %c0_i32_0 : i32, i32, i32
  }
  func.func @transform_1(%arg0: i32) -> (i32, i32, i32) {
    %c0_i32 = arith.constant 0 : i32
    %c0_i32_0 = arith.constant 0 : i32
    %c0_i32_1 = arith.constant 0 : i32
    %c0_i32_2 = arith.constant 0 : i32
    return %c0_i32, %c0_i32_0, %c0_i32_1 : i32, i32, i32
  }
  func.func @transform_2(%arg0: i32) -> (i32, i32, i32) {
    %c0_i32 = arith.constant 0 : i32
    %c0_i32_0 = arith.constant 0 : i32
    %c0_i32_1 = arith.constant 0 : i32
    %c0_i32_2 = arith.constant 0 : i32
    return %c0_i32, %c0_i32_0, %c0_i32_1 : i32, i32, i32
  }
  func.func @transform_3(%arg0: i32) -> (i32, i32) {
    %c0_i32 = arith.constant 0 : i32
    %c0_i32_0 = arith.constant 0 : i32
    %c0_i32_1 = arith.constant 0 : i32
    return %c0_i32, %c0_i32_0 : i32, i32
  }
  func.func @transform_4(%arg0: i32) -> (i32, i32, i32) {
    %c0_i32 = arith.constant 0 : i32
    %c0_i32_0 = arith.constant 0 : i32
    %c0_i32_1 = arith.constant 0 : i32
    return %arg0, %c0_i32, %c0_i32_0 : i32, i32, i32
  }
}

</mosaic_0001>

<llo_original>
// kernel: tpu_custom_call.1
$region0: #{tpu_custom_call.1}
  #allocation0 [shape = 'u32[]', space=smem, size = 0x4, offset = 0x4, fixed_abs, tag = 'smem constant byte address 0x4 - core index']
  #allocation1 [shape = 'u32[144,128]{1,0:T(1,128)}', space=vmem, size = 0x12000, scoped, tag = 'internal scratch']
  %s0 = inlined_call_operand.hbm [shape: bf16[2,16,128], index: 0, kind: input, shape index: {}]
  %s1 = inlined_call_operand.hbm [shape: bf16[4,128,128], index: 1, kind: input, shape index: {}]
  %s2 = inlined_call_operand.hbm [shape: bf16[4,128,128], index: 2, kind: input, shape index: {}]
  %s3 = inlined_call_operand.vmem [shape: f32[1,128], index: 3, kind: input, shape index: {}]
  %s4 = inlined_call_operand.hbm [shape: bf16[2,16,128], index: 4, kind: output, shape index: {}]
  %s5 = sld [smem:[#allocation0]]
  $region61: #{tpu_custom_call.1} parent=0
    _
  %s7 = ssub.s32 1, %s5
  %s8 = scalar_select 0, %s7, %s5
  $region1: #{tpu_custom_call.1} parent=0
    #allocation2 [shape = 'u8[8192]{0}', space=vmem, size = 0x2000, scoped, tag = 'input window, operand 0']
    #allocation3 [shape = 's32[2]{0}', space=sflag, size = 0x8, scoped, tag = 'scoped memory for tpu_custom_call.1']
    #allocation4 [shape = 's32[2]{0}', space=sflag, size = 0x8, scoped, tag = 'scoped memory for tpu_custom_call.1']
    #allocation5 [shape = 'u8[131072]{0}', space=vmem, size = 0x20000, scoped, tag = 'input window, operand 1, single buffered']
    #allocation6 [shape = 's32[1]{0}', space=sflag, size = 0x4, scoped, tag = 'scoped memory for tpu_custom_call.1']
    #allocation7 [shape = 'u8[131072]{0}', space=vmem, size = 0x20000, scoped, tag = 'input window, operand 2, single buffered']
    #allocation8 [shape = 'u8[8192]{0}', space=vmem, size = 0x2000, scoped, tag = 'output window, operand 0']
    %9 = vsyncpa [#allocation3], 0
    %s10 = scalar_lea.sflag [#allocation3], 1
    %11 = vsyncpa %s10, 0
    %12 = vsyncpa [#allocation6], 0
    %13 = vsyncpa [#allocation4], 0
    %s14 = scalar_lea.sflag [#allocation4], 1
    %15 = vsyncpa %s14, 0
    loop: start=0, step=1, limit=4
    $region2: #{tpu_custom_call.1} parent=1 // loop_pre_header
      _
    $region3: #{tpu_custom_call.1} parent=1 // loop_header
      %s17 = sphi 0, %s21
      %p18 = scmp.ge.s32.totalorder %s17, 4
      %s27 = sphi 0, %s29
      %s30 = sphi 0, %s27
      %s31 = sphi 0, %s30
      %s47 = sphi 0, %s31
      %s51 = sphi 0, %s51
      %s53 = sphi 0, %s51
      %s54 = sphi 0, %s53
      %s68 = sphi 0, %s54
      %s72 = sphi 0, %s72
      %s74 = sphi 0, %s72
      %s75 = sphi 0, %s74
      %s89 = sphi 0, %s75
      %s93 = sphi 0, %s93
      %s95 = sphi 0, %s93
      %s96 = sphi 0, %s95
      %s110 = sphi 0, %s96
      %s116 = sphi 0, %s118
      %s119 = sphi 0, %s116
      %s120 = sphi 0, %s119
      %s136 = sphi 0, %s120
    $region4: #{tpu_custom_call.1} parent=1 // loop_header_branch
      %20 = sbr.rel (%p18) target = $region8
    $region5: #{tpu_custom_call.1} parent=1 // loop_body
      %s22 = ssub.s32 %s17, 1
      %s23 = ssub.s32 %s17, 2
      %s24 = sadd.s32 %s17, 1
      %s25 = ssub.s32 %s17, %s24
      %p26 = scmp.eq.s32.totalorder %s25, 0
      %s28 = sadd.s32 %s27, 1
      %s29 = scalar_select %p26, %s27, %s28
      %p32 = pneg %p26
      %p33 = scmp.eq.s32.totalorder %s17, 1
      %p34 = por %p32, %p33
      %p35 = scmp.ne.s32.totalorder %s27, %s30
      %p36 = scmp.eq.s32.totalorder %s17, 0
      %p37 = por %p35, %p36
      %p38 = scmp.ne.s32.totalorder %s27, %s30
      %p39 = scmp.eq.s32.totalorder %s22, 1
      %p40 = por %p38, %p39
      %p41 = scmp.ne.s32.totalorder %s30, %s31
      %p42 = scmp.eq.s32.totalorder %s22, 0
      %p43 = por %p41, %p42
      %p44 = scmp.ne.s32.totalorder %s30, %s31
      %p45 = scmp.eq.s32.totalorder %s23, 1
      %p46 = por %p44, %p45
      %p48 = scmp.ne.s32.totalorder %s31, %s47
      %p49 = scmp.eq.s32.totalorder %s23, 0
      %p50 = por %p48, %p49
      %s52 = sadd.s32 %s51, 1
      %p55 = scmp.eq.s32.totalorder %s17, 1
      %p56 = scmp.ne.s32.totalorder %s51, %s53
      %p57 = scmp.eq.s32.totalorder %s17, 0
      %p58 = por %p56, %p57
      %p59 = scmp.ne.s32.totalorder %s51, %s53
      %p60 = scmp.eq.s32.totalorder %s22, 1
      %p61 = por %p59, %p60
      %p62 = scmp.ne.s32.totalorder %s53, %s54
      %p63 = scmp.eq.s32.totalorder %s22, 0
      %p64 = por %p62, %p63
      %p65 = scmp.ne.s32.totalorder %s53, %s54
      %p66 = scmp.eq.s32.totalorder %s23, 1
      %p67 = por %p65, %p66
      %p69 = scmp.ne.s32.totalorder %s54, %s68
      %p70 = scmp.eq.s32.totalorder %s23, 0
      %p71 = por %p69, %p70
      %s73 = sadd.s32 %s72, 1
      %p76 = scmp.eq.s32.totalorder %s17, 1
      %p77 = scmp.ne.s32.totalorder %s72, %s74
      %p78 = scmp.eq.s32.totalorder %s17, 0
      %p79 = por %p77, %p78
      %p80 = scmp.ne.s32.totalorder %s72, %s74
      %p81 = scmp.eq.s32.totalorder %s22, 1
      %p82 = por %p80, %p81
      %p83 = scmp.ne.s32.totalorder %s74, %s75
      %p84 = scmp.eq.s32.totalorder %s22, 0
      %p85 = por %p83, %p84
      %p86 = scmp.ne.s32.totalorder %s74, %s75
      %p87 = scmp.eq.s32.totalorder %s23, 1
      %p88 = por %p86, %p87
      %p90 = scmp.ne.s32.totalorder %s75, %s89
      %p91 = scmp.eq.s32.totalorder %s23, 0
      %p92 = por %p90, %p91
      %s94 = sadd.s32 %s93, 1
      %p97 = scmp.eq.s32.totalorder %s17, 1
      %p98 = scmp.ne.s32.totalorder %s93, %s95
      %p99 = scmp.eq.s32.totalorder %s17, 0
      %p100 = por %p98, %p99
      %p101 = scmp.ne.s32.totalorder %s93, %s95
      %p102 = scmp.eq.s32.totalorder %s22, 1
      %p103 = por %p101, %p102
      %p104 = scmp.ne.s32.totalorder %s95, %s96
      %p105 = scmp.eq.s32.totalorder %s22, 0
      %p106 = por %p104, %p105
      %p107 = scmp.ne.s32.totalorder %s95, %s96
      %p108 = scmp.eq.s32.totalorder %s23, 1
      %p109 = por %p107, %p108
      %p111 = scmp.ne.s32.totalorder %s96, %s110
      %p112 = scmp.eq.s32.totalorder %s23, 0
      %p113 = por %p111, %p112
      %s114 = ssub.s32 %s17, %s24
      %p115 = scmp.eq.s32.totalorder %s114, 0
      %s117 = sadd.s32 %s116, 1
      %s118 = scalar_select %p115, %s116, %s117
      %p121 = pneg %p115
      %p122 = scmp.eq.s32.totalorder %s17, 1
      %p123 = por %p121, %p122
      %p124 = scmp.ne.s32.totalorder %s116, %s119
      %p125 = scmp.eq.s32.totalorder %s17, 0
      %p126 = por %p124, %p125
      %p127 = scmp.ne.s32.totalorder %s116, %s119
      %p128 = scmp.eq.s32.totalorder %s22, 1
      %p129 = por %p127, %p128
      %p130 = scmp.ne.s32.totalorder %s119, %s120
      %p131 = scmp.eq.s32.totalorder %s22, 0
      %p132 = por %p130, %p131
      %p133 = scmp.ne.s32.totalorder %s119, %s120
      %p134 = scmp.eq.s32.totalorder %s23, 1
      %p135 = por %p133, %p134
      %p137 = scmp.ne.s32.totalorder %s120, %s136
      %p138 = scmp.eq.s32.totalorder %s23, 0
      %p139 = por %p137, %p138
      %p140 = scmp.le.s32.totalorder 1, %s17
      %p141 = scmp.lt.s32.totalorder %s17, 3
      %p142 = pnand %p140, %p141
      %p143 = pneg %p142
      // Predicated region
      $region9: #{tpu_custom_call.1} parent=5 // pred_check
        _
      $region10: #{tpu_custom_call.1} parent=5 // pred_check_branch
        %145 = sbr.rel (%p142) target = $region12
      $region11: #{tpu_custom_call.1} parent=5 // pred_region
        %s146 = ssub.s32 %s17, 1
        // Predicated region
        $region13: #{tpu_custom_call.1} parent=11 // pred_check
          %p147 = pneg %p64
        $region14: #{tpu_custom_call.1} parent=11 // pred_check_branch
          %149 = sbr.rel (%p147) target = $region16
        $region15: #{tpu_custom_call.1} parent=11 // pred_region
          %s151 = ssub.s32 4096, 4096
          %152 = vsyncadd [#allocation6], %s151
          %s153 = sshll.u32 [#allocation5], 4
          %s154 = int_to_ptr.vmem [resolvable:$true] %s153
          %159 = dma.hbm_to_vmem [thread:$0]  %s1, 4096, %s154, [#allocation6], 64, 64, 4
        $region16: #{tpu_custom_call.1} parent=11 // pred_fallthru
          _
        // Predicated region
        $region17: #{tpu_custom_call.1} parent=11 // pred_check
          %p160 = pneg %p85
        $region18: #{tpu_custom_call.1} parent=11 // pred_check_branch
          %162 = sbr.rel (%p160) target = $region20
        $region19: #{tpu_custom_call.1} parent=11 // pred_region
          %s164 = ssub.s32 4096, 4096
          %165 = vsyncadd [#allocation6], %s164
          %s166 = sshll.u32 [#allocation7], 4
          %s167 = int_to_ptr.vmem [resolvable:$true] %s166
          %172 = dma.hbm_to_vmem [thread:$0]  %s2, 4096, %s167, [#allocation6], 64, 64, 4
        $region20: #{tpu_custom_call.1} parent=11 // pred_fallthru
          _
        // Predicated region
        $region21: #{tpu_custom_call.1} parent=11 // pred_check
          %p173 = pneg %p106
        $region22: #{tpu_custom_call.1} parent=11 // pred_check_branch
          %175 = sbr.rel (%p173) target = $region24
        $region23: #{tpu_custom_call.1} parent=11 // pred_region
          _
        $region24: #{tpu_custom_call.1} parent=11 // pred_fallthru
          _
      $region12: #{tpu_custom_call.1} parent=5 // pred_fallthru
        _
      %p176 = scmp.lt.s32.totalorder %s17, 2
      // Predicated region
      $region25: #{tpu_custom_call.1} parent=5 // pred_check
        %p177 = pneg %p176
      $region26: #{tpu_custom_call.1} parent=5 // pred_check_branch
        %179 = sbr.rel (%p177) target = $region28
      $region27: #{tpu_custom_call.1} parent=5 // pred_region
        // Predicated region
        $region29: #{tpu_custom_call.1} parent=27 // pred_check
          %p180 = pneg %p37
        $region30: #{tpu_custom_call.1} parent=27 // pred_check_branch
          %182 = sbr.rel (%p180) target = $region32
        $region31: #{tpu_custom_call.1} parent=27 // pred_region
          %s183 = sand.u32 %s27, 1
          %s184 = scalar_lea.sflag [#allocation3], %s183
          %s185 = sand.u32 %s27, 1
          %s186 = smul.addr %s185, 8
          %s187 = scalar_lea.vmem [#allocation2], %s186
          %s189 = ssub.s32 128, 128
          %190 = vsyncadd %s184, %s189
          %s191 = smul.addr %s17, 2
          %s192 = smul.addr %s191, 64
          %s193 = scalar_lea.hbm %s0, %s192
          %s194 = sshll.u32 %s187, 4
          %s195 = int_to_ptr.vmem [resolvable:$true] %s194
          %200 = dma.hbm_to_vmem [thread:$0]  %s193, 128, %s195, %s184, 64, 64, 4
        $region32: #{tpu_custom_call.1} parent=27 // pred_fallthru
          _
      $region28: #{tpu_custom_call.1} parent=5 // pred_fallthru
        _
      %p201 = scmp.le.s32.totalorder 1, %s17
      %p202 = scmp.lt.s32.totalorder %s17, 3
      %p203 = pnand %p201, %p202
      %p204 = pneg %p203
      // Predicated region
      $region33: #{tpu_custom_call.1} parent=5 // pred_check
        _
      $region34: #{tpu_custom_call.1} parent=5 // pred_check_branch
        %206 = sbr.rel (%p203) target = $region36
      $region35: #{tpu_custom_call.1} parent=5 // pred_region
        %s207 = ssub.s32 %s17, 1
        %s208 = sand.u32 %s30, 1
        %s209 = scalar_lea.sflag [#allocation3], %s208
        %s210 = sand.u32 %s30, 1
        %s211 = smul.addr %s210, 8
        %s212 = scalar_lea.vmem [#allocation2], %s211
        // Predicated region
        $region37: #{tpu_custom_call.1} parent=35 // pred_check
          %p213 = pneg %p43
        $region38: #{tpu_custom_call.1} parent=35 // pred_check_branch
          %215 = sbr.rel (%p213) target = $region40
        $region39: #{tpu_custom_call.1} parent=35 // pred_region
          %216 = dma.done %s209, 128
        $region40: #{tpu_custom_call.1} parent=35 // pred_fallthru
          _
        // Predicated region
        $region41: #{tpu_custom_call.1} parent=35 // pred_check
          %p217 = pneg %p64
        $region42: #{tpu_custom_call.1} parent=35 // pred_check_branch
          %219 = sbr.rel (%p217) target = $region44
        $region43: #{tpu_custom_call.1} parent=35 // pred_region
          %220 = dma.done [#allocation6], 4096
        $region44: #{tpu_custom_call.1} parent=35 // pred_fallthru
          _
        // Predicated region
        $region45: #{tpu_custom_call.1} parent=35 // pred_check
          %p221 = pneg %p85
        $region46: #{tpu_custom_call.1} parent=35 // pred_check_branch
          %223 = sbr.rel (%p221) target = $region48
        $region47: #{tpu_custom_call.1} parent=35 // pred_region
          %224 = dma.done [#allocation6], 4096
        $region48: #{tpu_custom_call.1} parent=35 // pred_fallthru
          _
        %s225 = sand.u32 %s30, 1
        %s226 = scalar_lea.sflag [#allocation3], %s225
        %s227 = sand.u32 %s30, 1
        %s228 = smul.addr %s227, 8
        %s229 = scalar_lea.vmem [#allocation2], %s228
        %p230 = pneg %p43
        %p231 = pneg %p40
        %p232 = pneg %p64
        %p233 = pneg %p61
        %p234 = pneg %p85
        %p235 = pneg %p82
        %p236 = pneg %p106
        %p237 = pneg %p103
        %p238 = pneg %p132
        %p239 = pneg %p129
        %s240 = sand.u32 %s119, 1
        %s241 = scalar_lea.sflag [#allocation4], %s240
        %s242 = sand.u32 %s119, 1
        %s243 = smul.addr %s242, 8
        %s244 = scalar_lea.vmem [#allocation8], %s243
        %v246 = vld [vmem:[%s212] sm:$0xf]
        %v247 = vld [vmem:[%s212 + $0x4] sm:$0xf]
        %v248 = vld [vmem:[#allocation5] sm:$0xf]
        %v249 = vld [vmem:[#allocation5 + $0x4] sm:$0xf]
        %v250 = vld [vmem:[#allocation5 + $0x8] sm:$0xf]
        %v251 = vld [vmem:[#allocation5 + $0xc] sm:$0xf]
        %v252 = vld [vmem:[#allocation5 + $0x10] sm:$0xf]
        %v253 = vld [vmem:[#allocation5 + $0x14] sm:$0xf]
        %v254 = vld [vmem:[#allocation5 + $0x18] sm:$0xf]
        %v255 = vld [vmem:[#allocation5 + $0x1c] sm:$0xf]
        %v256 = vld [vmem:[#allocation5 + $0x20] sm:$0xf]
        %v257 = vld [vmem:[#allocation5 + $0x24] sm:$0xf]
        %v258 = vld [vmem:[#allocation5 + $0x28] sm:$0xf]
        %v259 = vld [vmem:[#allocation5 + $0x2c] sm:$0xf]
        %v260 = vld [vmem:[#allocation5 + $0x30] sm:$0xf]
        %v261 = vld [vmem:[#allocation5 + $0x34] sm:$0xf]
        %v262 = vld [vmem:[#allocation5 + $0x38] sm:$0xf]
        %v263 = vld [vmem:[#allocation5 + $0x3c] sm:$0xf]
        %v264 = vld [vmem:[#allocation5 + $0x40] sm:$0xf]
        %v265 = vld [vmem:[#allocation5 + $0x44] sm:$0xf]
        %v266 = vld [vmem:[#allocation5 + $0x48] sm:$0xf]
        %v267 = vld [vmem:[#allocation5 + $0x4c] sm:$0xf]
        %v268 = vld [vmem:[#allocation5 + $0x50] sm:$0xf]
        %v269 = vld [vmem:[#allocation5 + $0x54] sm:$0xf]
        %v270 = vld [vmem:[#allocation5 + $0x58] sm:$0xf]
        %v271 = vld [vmem:[#allocation5 + $0x5c] sm:$0xf]
        %v272 = vld [vmem:[#allocation5 + $0x60] sm:$0xf]
        %v273 = vld [vmem:[#allocation5 + $0x64] sm:$0xf]
        %v274 = vld [vmem:[#allocation5 + $0x68] sm:$0xf]
        %v275 = vld [vmem:[#allocation5 + $0x6c] sm:$0xf]
        %v276 = vld [vmem:[#allocation5 + $0x70] sm:$0xf]
        %v277 = vld [vmem:[#allocation5 + $0x74] sm:$0xf]
        %v278 = vld [vmem:[#allocation5 + $0x78] sm:$0xf]
        %v279 = vld [vmem:[#allocation5 + $0x7c] sm:$0xf]
        %v280 = vld [vmem:[#allocation5 + $0x80] sm:$0xf]
        %v281 = vld [vmem:[#allocation5 + $0x84] sm:$0xf]
        %v282 = vld [vmem:[#allocation5 + $0x88] sm:$0xf]
        %v283 = vld [vmem:[#allocation5 + $0x8c] sm:$0xf]
        %v284 = vld [vmem:[#allocation5 + $0x90] sm:$0xf]
        %v285 = vld [vmem:[#allocation5 + $0x94] sm:$0xf]
        %v286 = vld [vmem:[#allocation5 + $0x98] sm:$0xf]
        %v287 = vld [vmem:[#allocation5 + $0x9c] sm:$0xf]
        %v288 = vld [vmem:[#allocation5 + $0xa0] sm:$0xf]
        %v289 = vld [vmem:[#allocation5 + $0xa4] sm:$0xf]
        %v290 = vld [vmem:[#allocation5 + $0xa8] sm:$0xf]
        %v291 = vld [vmem:[#allocation5 + $0xac] sm:$0xf]
        %v292 = vld [vmem:[#allocation5 + $0xb0] sm:$0xf]
        %v293 = vld [vmem:[#allocation5 + $0xb4] sm:$0xf]
        %v294 = vld [vmem:[#allocation5 + $0xb8] sm:$0xf]
        %v295 = vld [vmem:[#allocation5 + $0xbc] sm:$0xf]
        %v296 = vld [vmem:[#allocation5 + $0xc0] sm:$0xf]
        %v297 = vld [vmem:[#allocation5 + $0xc4] sm:$0xf]
        %v298 = vld [vmem:[#allocation5 + $0xc8] sm:$0xf]
        %v299 = vld [vmem:[#allocation5 + $0xcc] sm:$0xf]
        %v300 = vld [vmem:[#allocation5 + $0xd0] sm:$0xf]
        %v301 = vld [vmem:[#allocation5 + $0xd4] sm:$0xf]
        %v302 = vld [vmem:[#allocation5 + $0xd8] sm:$0xf]
        %v303 = vld [vmem:[#allocation5 + $0xdc] sm:$0xf]
        %v304 = vld [vmem:[#allocation5 + $0xe0] sm:$0xf]
        %v305 = vld [vmem:[#allocation5 + $0xe4] sm:$0xf]
        %v306 = vld [vmem:[#allocation5 + $0xe8] sm:$0xf]
        %v307 = vld [vmem:[#allocation5 + $0xec] sm:$0xf]
        %v308 = vld [vmem:[#allocation5 + $0xf0] sm:$0xf]
        %v309 = vld [vmem:[#allocation5 + $0xf4] sm:$0xf]
        %v310 = vld [vmem:[#allocation5 + $0xf8] sm:$0xf]
        %v311 = vld [vmem:[#allocation5 + $0xfc] sm:$0xf]
        %v314 = vunpack.c.l.b16 %v246
        %v315 = vunpack.c.l.b16 %v247
        %v316 = vpack.c.b16 %v315, %v314
        %v334 = vunpack.c.l.b16 %v248
        %v335 = vunpack.c.l.b16 %v249
        %v336 = vunpack.c.l.b16 %v250
        %v337 = vunpack.c.l.b16 %v251
        %v338 = vunpack.c.l.b16 %v252
        %v339 = vunpack.c.l.b16 %v253
        %v340 = vunpack.c.l.b16 %v254
        %v341 = vunpack.c.l.b16 %v255
        %v342 = vunpack.c.l.b16 %v256
        %v343 = vunpack.c.l.b16 %v257
        %v344 = vunpack.c.l.b16 %v258
        %v345 = vunpack.c.l.b16 %v259
        %v346 = vunpack.c.l.b16 %v260
        %v347 = vunpack.c.l.b16 %v261
        %v348 = vunpack.c.l.b16 %v262
        %v349 = vunpack.c.l.b16 %v263
        %v350 = vpack.c.b16 %v335, %v334
        %v351 = vpack.c.b16 %v337, %v336
        %v352 = vpack.c.b16 %v339, %v338
        %v353 = vpack.c.b16 %v341, %v340
        %v354 = vpack.c.b16 %v343, %v342
        %v355 = vpack.c.b16 %v345, %v344
        %v356 = vpack.c.b16 %v347, %v346
        %v357 = vpack.c.b16 %v349, %v348
        %366 = vmatprep.subr.bf16.mxu0 0
        %367 = vmatpush1.bf16.msra.mxu0 %v350
        %368 = vmatprep.subr.bf16.mxu0 0
        %369 = vmatpush1.bf16.msra.mxu0 %v351
        %370 = vmatprep.subr.bf16.mxu0 0
        %371 = vmatpush1.bf16.msra.mxu0 %v352
        %372 = vmatprep.subr.bf16.mxu0 0
        %373 = vmatpush1.bf16.msra.mxu0 %v353
        %374 = vmatprep.subr.bf16.mxu0 0
        %375 = vmatpush1.bf16.msra.mxu0 %v354
        %376 = vmatprep.subr.bf16.mxu0 0
        %377 = vmatpush1.bf16.msra.mxu0 %v355
        %378 = vmatprep.subr.bf16.mxu0 0
        %379 = vmatpush1.bf16.msra.mxu0 %v356
        %380 = vmatprep.subr.bf16.mxu0 0
        %381 = vmatpush1.bf16.msra.mxu0 %v357
        %382 = vmatprep.subr.bf16.mxu0 0
        %383 = vmatpush1.bf16.msra.mxu0 0
        %384 = vmatprep.subr.bf16.mxu0 0
        %385 = vmatpush1.bf16.msra.mxu0 0
        %386 = vmatprep.subr.bf16.mxu0 0
        %387 = vmatpush1.bf16.msra.mxu0 0
        %388 = vmatprep.subr.bf16.mxu0 0
        %389 = vmatpush1.bf16.msra.mxu0 0
        %390 = vmatprep.subr.bf16.mxu0 0
        %391 = vmatpush1.bf16.msra.mxu0 0
        %392 = vmatprep.subr.bf16.mxu0 0
        %393 = vmatpush1.bf16.msra.mxu0 0
        %394 = vmatprep.subr.bf16.mxu0 0
        %395 = vmatpush1.bf16.msra.mxu0 0
        %396 = vmatprep.subr.bf16.mxu0 0
        %397 = vmatpush1.bf16.msra.mxu0 0
        %398 = vmatprep.mubr.bf16.mxu0 0
        %399 = vmatmul.mubr.bf16.gmra.mrb[0].mxu0 %v316
        %v400 = vpop.f32.mrb[0].mxu0
        %v401 = vadd.f32 0.0, %v400
        %v402 = vpop.f32.mrb[0].mxu0
        %v403 = vpop.f32.mrb[0].mxu0
        %v404 = vadd.f32 0.0, %v403
        %v405 = vpop.f32.mrb[0].mxu0
        %406 = vdwg.mxu0
        %v423 = vunpack.c.l.b16 %v264
        %v424 = vunpack.c.l.b16 %v265
        %v425 = vunpack.c.l.b16 %v266
        %v426 = vunpack.c.l.b16 %v267
        %v427 = vunpack.c.l.b16 %v268
        %v428 = vunpack.c.l.b16 %v269
        %v429 = vunpack.c.l.b16 %v270
        %v430 = vunpack.c.l.b16 %v271
        %v431 = vunpack.c.l.b16 %v272
        %v432 = vunpack.c.l.b16 %v273
        %v433 = vunpack.c.l.b16 %v274
        %v434 = vunpack.c.l.b16 %v275
        %v435 = vunpack.c.l.b16 %v276
        %v436 = vunpack.c.l.b16 %v277
        %v437 = vunpack.c.l.b16 %v278
        %v438 = vunpack.c.l.b16 %v279
        %v439 = vpack.c.b16 %v424, %v423
        %v440 = vpack.c.b16 %v426, %v425
        %v441 = vpack.c.b16 %v428, %v427
        %v442 = vpack.c.b16 %v430, %v429
        %v443 = vpack.c.b16 %v432, %v431
        %v444 = vpack.c.b16 %v434, %v433
        %v445 = vpack.c.b16 %v436, %v435
        %v446 = vpack.c.b16 %v438, %v437
        %455 = vmatprep.subr.bf16.mxu0 0
        %456 = vmatpush1.bf16.msra.mxu0 %v439
        %457 = vmatprep.subr.bf16.mxu0 0
        %458 = vmatpush1.bf16.msra.mxu0 %v440
        %459 = vmatprep.subr.bf16.mxu0 0
        %460 = vmatpush1.bf16.msra.mxu0 %v441
        %461 = vmatprep.subr.bf16.mxu0 0
        %462 = vmatpush1.bf16.msra.mxu0 %v442
        %463 = vmatprep.subr.bf16.mxu0 0
        %464 = vmatpush1.bf16.msra.mxu0 %v443
        %465 = vmatprep.subr.bf16.mxu0 0
        %466 = vmatpush1.bf16.msra.mxu0 %v444
        %467 = vmatprep.subr.bf16.mxu0 0
        %468 = vmatpush1.bf16.msra.mxu0 %v445
        %469 = vmatprep.subr.bf16.mxu0 0
        %470 = vmatpush1.bf16.msra.mxu0 %v446
        %471 = vmatprep.subr.bf16.mxu0 0
        %472 = vmatpush1.bf16.msra.mxu0 0
        %473 = vmatprep.subr.bf16.mxu0 0
        %474 = vmatpush1.bf16.msra.mxu0 0
        %475 = vmatprep.subr.bf16.mxu0 0
        %476 = vmatpush1.bf16.msra.mxu0 0
        %477 = vmatprep.subr.bf16.mxu0 0
        %478 = vmatpush1.bf16.msra.mxu0 0
        %479 = vmatprep.subr.bf16.mxu0 0
        %480 = vmatpush1.bf16.msra.mxu0 0
        %481 = vmatprep.subr.bf16.mxu0 0
        %482 = vmatpush1.bf16.msra.mxu0 0
        %483 = vmatprep.subr.bf16.mxu0 0
        %484 = vmatpush1.bf16.msra.mxu0 0
        %485 = vmatprep.subr.bf16.mxu0 0
        %486 = vmatpush1.bf16.msra.mxu0 0
        %487 = vmatprep.mubr.bf16.mxu0 0
        %488 = vmatmul.mubr.bf16.gmra.mrb[0].mxu0 %v316
        %v489 = vpop.f32.mrb[0].mxu0
        %v490 = vadd.f32 0.0, %v489
        %v491 = vpop.f32.mrb[0].mxu0
        %v492 = vpop.f32.mrb[0].mxu0
        %v493 = vadd.f32 0.0, %v492
        %v494 = vpop.f32.mrb[0].mxu0
        %495 = vdwg.mxu0
        %v512 = vunpack.c.l.b16 %v280
        %v513 = vunpack.c.l.b16 %v281
        %v514 = vunpack.c.l.b16 %v282
        %v515 = vunpack.c.l.b16 %v283
        %v516 = vunpack.c.l.b16 %v284
        %v517 = vunpack.c.l.b16 %v285
        %v518 = vunpack.c.l.b16 %v286
        %v519 = vunpack.c.l.b16 %v287
        %v520 = vunpack.c.l.b16 %v288
        %v521 = vunpack.c.l.b16 %v289
        %v522 = vunpack.c.l.b16 %v290
        %v523 = vunpack.c.l.b16 %v291
        %v524 = vunpack.c.l.b16 %v292
        %v525 = vunpack.c.l.b16 %v293
        %v526 = vunpack.c.l.b16 %v294
        %v527 = vunpack.c.l.b16 %v295
        %v528 = vpack.c.b16 %v513, %v512
        %v529 = vpack.c.b16 %v515, %v514
        %v530 = vpack.c.b16 %v517, %v516
        %v531 = vpack.c.b16 %v519, %v518
        %v532 = vpack.c.b16 %v521, %v520
        %v533 = vpack.c.b16 %v523, %v522
        %v534 = vpack.c.b16 %v525, %v524
        %v535 = vpack.c.b16 %v527, %v526
        %544 = vmatprep.subr.bf16.mxu0 0
        %545 = vmatpush1.bf16.msra.mxu0 %v528
        %546 = vmatprep.subr.bf16.mxu0 0
        %547 = vmatpush1.bf16.msra.mxu0 %v529
        %548 = vmatprep.subr.bf16.mxu0 0
        %549 = vmatpush1.bf16.msra.mxu0 %v530
        %550 = vmatprep.subr.bf16.mxu0 0
        %551 = vmatpush1.bf16.msra.mxu0 %v531
        %552 = vmatprep.subr.bf16.mxu0 0
        %553 = vmatpush1.bf16.msra.mxu0 %v532
        %554 = vmatprep.subr.bf16.mxu0 0
        %555 = vmatpush1.bf16.msra.mxu0 %v533
        %556 = vmatprep.subr.bf16.mxu0 0
        %557 = vmatpush1.bf16.msra.mxu0 %v534
        %558 = vmatprep.subr.bf16.mxu0 0
        %559 = vmatpush1.bf16.msra.mxu0 %v535
        %560 = vmatprep.subr.bf16.mxu0 0
        %561 = vmatpush1.bf16.msra.mxu0 0
        %562 = vmatprep.subr.bf16.mxu0 0
        %563 = vmatpush1.bf16.msra.mxu0 0
        %564 = vmatprep.subr.bf16.mxu0 0
        %565 = vmatpush1.bf16.msra.mxu0 0
        %566 = vmatprep.subr.bf16.mxu0 0
        %567 = vmatpush1.bf16.msra.mxu0 0
        %568 = vmatprep.subr.bf16.mxu0 0
        %569 = vmatpush1.bf16.msra.mxu0 0
        %570 = vmatprep.subr.bf16.mxu0 0
        %571 = vmatpush1.bf16.msra.mxu0 0
        %572 = vmatprep.subr.bf16.mxu0 0
        %573 = vmatpush1.bf16.msra.mxu0 0
        %574 = vmatprep.subr.bf16.mxu0 0
        %575 = vmatpush1.bf16.msra.mxu0 0
        %576 = vmatprep.mubr.bf16.mxu0 0
        %577 = vmatmul.mubr.bf16.gmra.mrb[0].mxu0 %v316
        %v578 = vpop.f32.mrb[0].mxu0
        %v579 = vadd.f32 0.0, %v578
        %v580 = vpop.f32.mrb[0].mxu0
        %v581 = vpop.f32.mrb[0].mxu0
        %v582 = vadd.f32 0.0, %v581
        %v583 = vpop.f32.mrb[0].mxu0
        %584 = vdwg.mxu0
        %v601 = vunpack.c.l.b16 %v296
        %v602 = vunpack.c.l.b16 %v297
        %v603 = vunpack.c.l.b16 %v298
        %v604 = vunpack.c.l.b16 %v299
        %v605 = vunpack.c.l.b16 %v300
        %v606 = vunpack.c.l.b16 %v301
        %v607 = vunpack.c.l.b16 %v302
        %v608 = vunpack.c.l.b16 %v303
        %v609 = vunpack.c.l.b16 %v304
        %v610 = vunpack.c.l.b16 %v305
        %v611 = vunpack.c.l.b16 %v306
        %v612 = vunpack.c.l.b16 %v307
        %v613 = vunpack.c.l.b16 %v308
        %v614 = vunpack.c.l.b16 %v309
        %v615 = vunpack.c.l.b16 %v310
        %v616 = vunpack.c.l.b16 %v311
        %v617 = vpack.c.b16 %v602, %v601
        %v618 = vpack.c.b16 %v604, %v603
        %v619 = vpack.c.b16 %v606, %v605
        %v620 = vpack.c.b16 %v608, %v607
        %v621 = vpack.c.b16 %v610, %v609
        %v622 = vpack.c.b16 %v612, %v611
        %v623 = vpack.c.b16 %v614, %v613
        %v624 = vpack.c.b16 %v616, %v615
        %633 = vmatprep.subr.bf16.mxu0 0
        %634 = vmatpush1.bf16.msra.mxu0 %v617
        %635 = vmatprep.subr.bf16.mxu0 0
        %636 = vmatpush1.bf16.msra.mxu0 %v618
        %637 = vmatprep.subr.bf16.mxu0 0
        %638 = vmatpush1.bf16.msra.mxu0 %v619
        %639 = vmatprep.subr.bf16.mxu0 0
        %640 = vmatpush1.bf16.msra.mxu0 %v620
        %641 = vmatprep.subr.bf16.mxu0 0
        %642 = vmatpush1.bf16.msra.mxu0 %v621
        %643 = vmatprep.subr.bf16.mxu0 0
        %644 = vmatpush1.bf16.msra.mxu0 %v622
        %645 = vmatprep.subr.bf16.mxu0 0
        %646 = vmatpush1.bf16.msra.mxu0 %v623
        %647 = vmatprep.subr.bf16.mxu0 0
        %648 = vmatpush1.bf16.msra.mxu0 %v624
        %649 = vmatprep.subr.bf16.mxu0 0
        %650 = vmatpush1.bf16.msra.mxu0 0
        %651 = vmatprep.subr.bf16.mxu0 0
        %652 = vmatpush1.bf16.msra.mxu0 0
        %653 = vmatprep.subr.bf16.mxu0 0
        %654 = vmatpush1.bf16.msra.mxu0 0
        %655 = vmatprep.subr.bf16.mxu0 0
        %656 = vmatpush1.bf16.msra.mxu0 0
        %657 = vmatprep.subr.bf16.mxu0 0
        %658 = vmatpush1.bf16.msra.mxu0 0
        %659 = vmatprep.subr.bf16.mxu0 0
        %660 = vmatpush1.bf16.msra.mxu0 0
        %661 = vmatprep.subr.bf16.mxu0 0
        %662 = vmatpush1.bf16.msra.mxu0 0
        %663 = vmatprep.subr.bf16.mxu0 0
        %664 = vmatpush1.bf16.msra.mxu0 0
        %665 = vmatprep.mubr.bf16.mxu0 0
        %666 = vmatmul.mubr.bf16.gmra.mrb[0].mxu0 %v316
        %v667 = vpop.f32.mrb[0].mxu0
        %v668 = vadd.f32 0.0, %v667
        %v669 = vpop.f32.mrb[0].mxu0
        %v670 = vpop.f32.mrb[0].mxu0
        %v671 = vadd.f32 0.0, %v670
        %v672 = vpop.f32.mrb[0].mxu0
        %673 = vdwg.mxu0
        %v674 = vpack.c.bf16 %v404, %v401
        %v675 = vpack.c.bf16 %v493, %v490
        %v676 = vpack.c.bf16 %v582, %v579
        %v677 = vpack.c.bf16 %v671, %v668
        %678 = vmatprep.subr.bf16.mxu0 0
        %679 = vmatpush1.bf16.xpose.msra.mxu0 %v316
        %680 = vmatprep.subr.bf16.mxu0 0
        %681 = vmatpush1.bf16.xpose.msra.mxu0 0
        %682 = vmatprep.subr.bf16.mxu0 0
        %683 = vmatpush1.bf16.xpose.msra.mxu0 0
        %684 = vmatprep.subr.bf16.mxu0 0
        %685 = vmatpush1.bf16.xpose.msra.mxu0 0
        %686 = vmatprep.subr.bf16.mxu0 0
        %687 = vmatpush1.bf16.xpose.msra.mxu0 0
        %688 = vmatprep.subr.bf16.mxu0 0
        %689 = vmatpush1.bf16.xpose.msra.mxu0 0
        %690 = vmatprep.subr.bf16.mxu0 0
        %691 = vmatpush1.bf16.xpose.msra.mxu0 0
        %692 = vmatprep.subr.bf16.mxu0 0
        %693 = vmatpush1.bf16.xpose.msra.mxu0 0
        %694 = vmatprep.subr.bf16.mxu0 0
        %695 = vmatpush1.bf16.xpose.msra.mxu0 0
        %696 = vmatprep.subr.bf16.mxu0 0
        %697 = vmatpush1.bf16.xpose.msra.mxu0 0
        %698 = vmatprep.subr.bf16.mxu0 0
        %699 = vmatpush1.bf16.xpose.msra.mxu0 0
        %700 = vmatprep.subr.bf16.mxu0 0
        %701 = vmatpush1.bf16.xpose.msra.mxu0 0
        %702 = vmatprep.subr.bf16.mxu0 0
        %703 = vmatpush1.bf16.xpose.msra.mxu0 0
        %704 = vmatprep.subr.bf16.mxu0 0
        %705 = vmatpush1.bf16.xpose.msra.mxu0 0
        %706 = vmatprep.subr.bf16.mxu0 0
        %707 = vmatpush1.bf16.xpose.msra.mxu0 0
        %708 = vmatprep.subr.bf16.mxu0 0
        %709 = vmatpush1.bf16.xpose.msra.mxu0 0
        %710 = vmatprep.mubr.bf16.mxu0 0
        %711 = vmatmul.mubr.bf16.gmra.mrb[0].mxu0 %v674
        %v712 = vpop.f32.mrb[0].mxu0
        %v713 = vadd.f32 0.0, %v712
        %v714 = vpop.f32.mrb[0].mxu0
        %v715 = vpop.f32.mrb[0].mxu0
        %v716 = vadd.f32 0.0, %v715
        %v717 = vpop.f32.mrb[0].mxu0
        %718 = vdwg.mxu0
        %719 = vmatprep.subr.bf16.mxu0 0
        %720 = vmatpush1.bf16.xpose.msra.mxu0 %v316
        %721 = vmatprep.subr.bf16.mxu0 0
        %722 = vmatpush1.bf16.xpose.msra.mxu0 0
        %723 = vmatprep.subr.bf16.mxu0 0
        %724 = vmatpush1.bf16.xpose.msra.mxu0 0
        %725 = vmatprep.subr.bf16.mxu0 0
        %726 = vmatpush1.bf16.xpose.msra.mxu0 0
        %727 = vmatprep.subr.bf16.mxu0 0
        %728 = vmatpush1.bf16.xpose.msra.mxu0 0
        %729 = vmatprep.subr.bf16.mxu0 0
        %730 = vmatpush1.bf16.xpose.msra.mxu0 0
        %731 = vmatprep.subr.bf16.mxu0 0
        %732 = vmatpush1.bf16.xpose.msra.mxu0 0
        %733 = vmatprep.subr.bf16.mxu0 0
        %734 = vmatpush1.bf16.xpose.msra.mxu0 0
        %735 = vmatprep.subr.bf16.mxu0 0
        %736 = vmatpush1.bf16.xpose.msra.mxu0 0
        %737 = vmatprep.subr.bf16.mxu0 0
        %738 = vmatpush1.bf16.xpose.msra.mxu0 0
        %739 = vmatprep.subr.bf16.mxu0 0
        %740 = vmatpush1.bf16.xpose.msra.mxu0 0
        %741 = vmatprep.subr.bf16.mxu0 0
        %742 = vmatpush1.bf16.xpose.msra.mxu0 0
        %743 = vmatprep.subr.bf16.mxu0 0
        %744 = vmatpush1.bf16.xpose.msra.mxu0 0
        %745 = vmatprep.subr.bf16.mxu0 0
        %746 = vmatpush1.bf16.xpose.msra.mxu0 0
        %747 = vmatprep.subr.bf16.mxu0 0
        %748 = vmatpush1.bf16.xpose.msra.mxu0 0
        %749 = vmatprep.subr.bf16.mxu0 0
        %750 = vmatpush1.bf16.xpose.msra.mxu0 0
        %751 = vmatprep.mubr.bf16.mxu0 0
        %752 = vmatmul.mubr.bf16.gmra.mrb[0].mxu0 %v675
        %v753 = vpop.f32.mrb[0].mxu0
        %v754 = vadd.f32 0.0, %v753
        %v755 = vpop.f32.mrb[0].mxu0
        %v756 = vpop.f32.mrb[0].mxu0
        %v757 = vadd.f32 0.0, %v756
        %v758 = vpop.f32.mrb[0].mxu0
        %759 = vdwg.mxu0
        %760 = vmatprep.subr.bf16.mxu0 0
        %761 = vmatpush1.bf16.xpose.msra.mxu0 %v316
        %762 = vmatprep.subr.bf16.mxu0 0
        %763 = vmatpush1.bf16.xpose.msra.mxu0 0
        %764 = vmatprep.subr.bf16.mxu0 0
        %765 = vmatpush1.bf16.xpose.msra.mxu0 0
        %766 = vmatprep.subr.bf16.mxu0 0
        %767 = vmatpush1.bf16.xpose.msra.mxu0 0
        %768 = vmatprep.subr.bf16.mxu0 0
        %769 = vmatpush1.bf16.xpose.msra.mxu0 0
        %770 = vmatprep.subr.bf16.mxu0 0
        %771 = vmatpush1.bf16.xpose.msra.mxu0 0
        %772 = vmatprep.subr.bf16.mxu0 0
        %773 = vmatpush1.bf16.xpose.msra.mxu0 0
        %774 = vmatprep.subr.bf16.mxu0 0
        %775 = vmatpush1.bf16.xpose.msra.mxu0 0
        %776 = vmatprep.subr.bf16.mxu0 0
        %777 = vmatpush1.bf16.xpose.msra.mxu0 0
        %778 = vmatprep.subr.bf16.mxu0 0
        %779 = vmatpush1.bf16.xpose.msra.mxu0 0
        %780 = vmatprep.subr.bf16.mxu0 0
        %781 = vmatpush1.bf16.xpose.msra.mxu0 0
        %782 = vmatprep.subr.bf16.mxu0 0
        %783 = vmatpush1.bf16.xpose.msra.mxu0 0
        %784 = vmatprep.subr.bf16.mxu0 0
        %785 = vmatpush1.bf16.xpose.msra.mxu0 0
        %786 = vmatprep.subr.bf16.mxu0 0
        %787 = vmatpush1.bf16.xpose.msra.mxu0 0
        %788 = vmatprep.subr.bf16.mxu0 0
        %789 = vmatpush1.bf16.xpose.msra.mxu0 0
        %790 = vmatprep.subr.bf16.mxu0 0
        %791 = vmatpush1.bf16.xpose.msra.mxu0 0
        %792 = vmatprep.mubr.bf16.mxu0 0
        %793 = vmatmul.mubr.bf16.gmra.mrb[0].mxu0 %v676
        %v794 = vpop.f32.mrb[0].mxu0
        %v795 = vadd.f32 0.0, %v794
        %v796 = vpop.f32.mrb[0].mxu0
        %v797 = vpop.f32.mrb[0].mxu0
        %v798 = vadd.f32 0.0, %v797
        %v799 = vpop.f32.mrb[0].mxu0
        %800 = vdwg.mxu0
        %801 = vmatprep.subr.bf16.mxu0 0
        %802 = vmatpush1.bf16.xpose.msra.mxu0 %v316
        %803 = vmatprep.subr.bf16.mxu0 0
        %804 = vmatpush1.bf16.xpose.msra.mxu0 0
        %805 = vmatprep.subr.bf16.mxu0 0
        %806 = vmatpush1.bf16.xpose.msra.mxu0 0
        %807 = vmatprep.subr.bf16.mxu0 0
        %808 = vmatpush1.bf16.xpose.msra.mxu0 0
        %809 = vmatprep.subr.bf16.mxu0 0
        %810 = vmatpush1.bf16.xpose.msra.mxu0 0
        %811 = vmatprep.subr.bf16.mxu0 0
        %812 = vmatpush1.bf16.xpose.msra.mxu0 0
        %813 = vmatprep.subr.bf16.mxu0 0
        %814 = vmatpush1.bf16.xpose.msra.mxu0 0
        %815 = vmatprep.subr.bf16.mxu0 0
        %816 = vmatpush1.bf16.xpose.msra.mxu0 0
        %817 = vmatprep.subr.bf16.mxu0 0
        %818 = vmatpush1.bf16.xpose.msra.mxu0 0
        %819 = vmatprep.subr.bf16.mxu0 0
        %820 = vmatpush1.bf16.xpose.msra.mxu0 0
        %821 = vmatprep.subr.bf16.mxu0 0
        %822 = vmatpush1.bf16.xpose.msra.mxu0 0
        %823 = vmatprep.subr.bf16.mxu0 0
        %824 = vmatpush1.bf16.xpose.msra.mxu0 0
        %825 = vmatprep.subr.bf16.mxu0 0
        %826 = vmatpush1.bf16.xpose.msra.mxu0 0
        %827 = vmatprep.subr.bf16.mxu0 0
        %828 = vmatpush1.bf16.xpose.msra.mxu0 0
        %829 = vmatprep.subr.bf16.mxu0 0
        %830 = vmatpush1.bf16.xpose.msra.mxu0 0
        %831 = vmatprep.subr.bf16.mxu0 0
        %832 = vmatpush1.bf16.xpose.msra.mxu0 0
        %833 = vmatprep.mubr.bf16.mxu0 0
        %834 = vmatmul.mubr.bf16.gmra.mrb[0].mxu0 %v677
        %v835 = vpop.f32.mrb[0].mxu0
        %v836 = vadd.f32 0.0, %v835
        %v837 = vpop.f32.mrb[0].mxu0
        %v838 = vpop.f32.mrb[0].mxu0
        %v839 = vadd.f32 0.0, %v838
        %v840 = vpop.f32.mrb[0].mxu0
        %841 = vdwg.mxu0
        %vm842 = vcmask 130048
        %v843 = vsel %vm842, %v713, -inf
        %844 = vmax.xlane.f32.xlu0 %v843
        %v845 = vpop.xlane.xlu0 %844
        %v846 = vsel %vm842, %v716, -inf
        %847 = vmax.xlane.f32.xlu0 %v846
        %v848 = vpop.xlane.xlu0 %847
        %v849 = vsel %vm842, %v754, -inf
        %850 = vmax.xlane.f32.xlu0 %v849
        %v851 = vpop.xlane.xlu0 %850
        %v852 = vsel %vm842, %v757, -inf
        %853 = vmax.xlane.f32.xlu0 %v852
        %v854 = vpop.xlane.xlu0 %853
        %v855 = vsel %vm842, %v795, -inf
        %856 = vmax.xlane.f32.xlu0 %v855
        %v857 = vpop.xlane.xlu0 %856
        %v858 = vsel %vm842, %v798, -inf
        %859 = vmax.xlane.f32.xlu0 %v858
        %v860 = vpop.xlane.xlu0 %859
        %v861 = vsel %vm842, %v836, -inf
        %862 = vmax.xlane.f32.xlu0 %v861
        %v863 = vpop.xlane.xlu0 %862
        %v864 = vsel %vm842, %v839, -inf
        %865 = vmax.xlane.f32.xlu0 %v864
        %v866 = vpop.xlane.xlu0 %865
        %v867 = vsub.f32 %v713, %v845
        %v868 = vsub.f32 %v716, %v848
        %v869 = vsub.f32 %v754, %v851
        %v870 = vsub.f32 %v757, %v854
        %v871 = vsub.f32 %v795, %v857
        %v872 = vsub.f32 %v798, %v860
        %v873 = vsub.f32 %v836, %v863
        %v874 = vsub.f32 %v839, %v866
        %v875 = vmul.f32 %v867, 1.442695
        %v876 = vpow.pop %v875
        %v877 = vmul.f32 %v868, 1.442695
        %v878 = vpow.pop %v877
        %v879 = vmul.f32 %v869, 1.442695
        %v880 = vpow.pop %v879
        %v881 = vmul.f32 %v870, 1.442695
        %v882 = vpow.pop %v881
        %v883 = vmul.f32 %v871, 1.442695
        %v884 = vpow.pop %v883
        %v885 = vmul.f32 %v872, 1.442695
        %v886 = vpow.pop %v885
        %v887 = vmul.f32 %v873, 1.442695
        %v888 = vpow.pop %v887
        %v889 = vmul.f32 %v874, 1.442695
        %v890 = vpow.pop %v889
        %v891 = vsel %vm842, %v876, 0.0
        %892 = vadd.xlane.f32.xlu0 %v891
        %v893 = vpop.xlane.xlu0 %892
        %v894 = vsel %vm842, %v878, 0.0
        %895 = vadd.xlane.f32.xlu0 %v894
        %v896 = vpop.xlane.xlu0 %895
        %v897 = vsel %vm842, %v880, 0.0
        %898 = vadd.xlane.f32.xlu0 %v897
        %v899 = vpop.xlane.xlu0 %898
        %v900 = vsel %vm842, %v882, 0.0
        %901 = vadd.xlane.f32.xlu0 %v900
        %v902 = vpop.xlane.xlu0 %901
        %v903 = vsel %vm842, %v884, 0.0
        %904 = vadd.xlane.f32.xlu0 %v903
        %v905 = vpop.xlane.xlu0 %904
        %v906 = vsel %vm842, %v886, 0.0
        %907 = vadd.xlane.f32.xlu0 %v906
        %v908 = vpop.xlane.xlu0 %907
        %v909 = vsel %vm842, %v888, 0.0
        %910 = vadd.xlane.f32.xlu0 %v909
        %v911 = vpop.xlane.xlu0 %910
        %v912 = vsel %vm842, %v890, 0.0
        %913 = vadd.xlane.f32.xlu0 %v912
        %v914 = vpop.xlane.xlu0 %913
        %v915 = vrcp.pop %v893
        %v916 = vrcp.pop %v896
        %v917 = vrcp.pop %v899
        %v918 = vrcp.pop %v902
        %v919 = vrcp.pop %v905
        %v920 = vrcp.pop %v908
        %v921 = vrcp.pop %v911
        %v922 = vrcp.pop %v914
        %v923 = vmul.f32 %v876, %v915
        %v924 = vmul.f32 %v878, %v916
        %v925 = vmul.f32 %v880, %v917
        %v926 = vmul.f32 %v882, %v918
        %v927 = vmul.f32 %v884, %v919
        %v928 = vmul.f32 %v886, %v920
        %v929 = vmul.f32 %v888, %v921
        %v930 = vmul.f32 %v890, %v922
        %v931 = vpack.c.bf16 %v924, %v923
        %v932 = vpack.c.bf16 %v926, %v925
        %v933 = vpack.c.bf16 %v928, %v927
        %v934 = vpack.c.bf16 %v930, %v929
        %v936 = vsel %vm842, %v931, 0
        %938 = vmatprep.subr.bf16.mxu0 0
        %939 = vmatpush1.bf16.msra.mxu0 %v316
        %940 = vmatprep.subr.bf16.mxu0 0
        %941 = vmatpush1.bf16.msra.mxu0 0
        %942 = vmatprep.subr.bf16.mxu0 0
        %943 = vmatpush1.bf16.msra.mxu0 0
        %944 = vmatprep.subr.bf16.mxu0 0
        %945 = vmatpush1.bf16.msra.mxu0 0
        %946 = vmatprep.subr.bf16.mxu0 0
        %947 = vmatpush1.bf16.msra.mxu0 0
        %948 = vmatprep.subr.bf16.mxu0 0
        %949 = vmatpush1.bf16.msra.mxu0 0
        %950 = vmatprep.subr.bf16.mxu0 0
        %951 = vmatpush1.bf16.msra.mxu0 0
        %952 = vmatprep.subr.bf16.mxu0 0
        %953 = vmatpush1.bf16.msra.mxu0 0
        %954 = vmatprep.subr.bf16.mxu0 0
        %955 = vmatpush1.bf16.msra.mxu0 0
        %956 = vmatprep.subr.bf16.mxu0 0
        %957 = vmatpush1.bf16.msra.mxu0 0
        %958 = vmatprep.subr.bf16.mxu0 0
        %959 = vmatpush1.bf16.msra.mxu0 0
        %960 = vmatprep.subr.bf16.mxu0 0
        %961 = vmatpush1.bf16.msra.mxu0 0
        %962 = vmatprep.subr.bf16.mxu0 0
        %963 = vmatpush1.bf16.msra.mxu0 0
        %964 = vmatprep.subr.bf16.mxu0 0
        %965 = vmatpush1.bf16.msra.mxu0 0
        %966 = vmatprep.subr.bf16.mxu0 0
        %967 = vmatpush1.bf16.msra.mxu0 0
        %968 = vmatprep.subr.bf16.mxu0 0
        %969 = vmatpush1.bf16.msra.mxu0 0
        %970 = vmatprep.mubr.bf16.mxu0 0
        %971 = vmatmul.mubr.bf16.gmra.mrb[0].mxu0 %v936
        %v972 = vpop.f32.mrb[0].mxu0
        %v973 = vadd.f32 0.0, %v972
        %v974 = vpop.f32.mrb[0].mxu0
        %v975 = vpop.f32.mrb[0].mxu0
        %v976 = vadd.f32 0.0, %v975
        %v977 = vpop.f32.mrb[0].mxu0
        %978 = vdwg.mxu0
        %v980 = vsel %vm842, %v932, 0
        %982 = vmatprep.subr.bf16.mxu0 0
        %983 = vmatpush1.bf16.msra.mxu0 %v316
        %984 = vmatprep.subr.bf16.mxu0 0
        %985 = vmatpush1.bf16.msra.mxu0 0
        %986 = vmatprep.subr.bf16.mxu0 0
        %987 = vmatpush1.bf16.msra.mxu0 0
        %988 = vmatprep.subr.bf16.mxu0 0
        %989 = vmatpush1.bf16.msra.mxu0 0
        %990 = vmatprep.subr.bf16.mxu0 0
        %991 = vmatpush1.bf16.msra.mxu0 0
        %992 = vmatprep.subr.bf16.mxu0 0
        %993 = vmatpush1.bf16.msra.mxu0 0
        %994 = vmatprep.subr.bf16.mxu0 0
        %995 = vmatpush1.bf16.msra.mxu0 0
        %996 = vmatprep.subr.bf16.mxu0 0
        %997 = vmatpush1.bf16.msra.mxu0 0
        %998 = vmatprep.subr.bf16.mxu0 0
        %999 = vmatpush1.bf16.msra.mxu0 0
        %1000 = vmatprep.subr.bf16.mxu0 0
        %1001 = vmatpush1.bf16.msra.mxu0 0
        %1002 = vmatprep.subr.bf16.mxu0 0
        %1003 = vmatpush1.bf16.msra.mxu0 0
        %1004 = vmatprep.subr.bf16.mxu0 0
        %1005 = vmatpush1.bf16.msra.mxu0 0
        %1006 = vmatprep.subr.bf16.mxu0 0
        %1007 = vmatpush1.bf16.msra.mxu0 0
        %1008 = vmatprep.subr.bf16.mxu0 0
        %1009 = vmatpush1.bf16.msra.mxu0 0
        %1010 = vmatprep.subr.bf16.mxu0 0
        %1011 = vmatpush1.bf16.msra.mxu0 0
        %1012 = vmatprep.subr.bf16.mxu0 0
        %1013 = vmatpush1.bf16.msra.mxu0 0
        %1014 = vmatprep.mubr.bf16.mxu0 0
        %1015 = vmatmul.mubr.bf16.gmra.mrb[0].mxu0 %v980
        %v1016 = vpop.f32.mrb[0].mxu0
        %v1017 = vadd.f32 0.0, %v1016
        %v1018 = vpop.f32.mrb[0].mxu0
        %v1019 = vpop.f32.mrb[0].mxu0
        %v1020 = vadd.f32 0.0, %v1019
        %v1021 = vpop.f32.mrb[0].mxu0
        %1022 = vdwg.mxu0
        %v1024 = vsel %vm842, %v933, 0
        %1026 = vmatprep.subr.bf16.mxu0 0
        %1027 = vmatpush1.bf16.msra.mxu0 %v316
        %1028 = vmatprep.subr.bf16.mxu0 0
        %1029 = vmatpush1.bf16.msra.mxu0 0
        %1030 = vmatprep.subr.bf16.mxu0 0
        %1031 = vmatpush1.bf16.msra.mxu0 0
        %1032 = vmatprep.subr.bf16.mxu0 0
        %1033 = vmatpush1.bf16.msra.mxu0 0
        %1034 = vmatprep.subr.bf16.mxu0 0
        %1035 = vmatpush1.bf16.msra.mxu0 0
        %1036 = vmatprep.subr.bf16.mxu0 0
        %1037 = vmatpush1.bf16.msra.mxu0 0
        %1038 = vmatprep.subr.bf16.mxu0 0
        %1039 = vmatpush1.bf16.msra.mxu0 0
        %1040 = vmatprep.subr.bf16.mxu0 0
        %1041 = vmatpush1.bf16.msra.mxu0 0
        %1042 = vmatprep.subr.bf16.mxu0 0
        %1043 = vmatpush1.bf16.msra.mxu0 0
        %1044 = vmatprep.subr.bf16.mxu0 0
        %1045 = vmatpush1.bf16.msra.mxu0 0
        %1046 = vmatprep.subr.bf16.mxu0 0
        %1047 = vmatpush1.bf16.msra.mxu0 0
        %1048 = vmatprep.subr.bf16.mxu0 0
        %1049 = vmatpush1.bf16.msra.mxu0 0
        %1050 = vmatprep.subr.bf16.mxu0 0
        %1051 = vmatpush1.bf16.msra.mxu0 0
        %1052 = vmatprep.subr.bf16.mxu0 0
        %1053 = vmatpush1.bf16.msra.mxu0 0
        %1054 = vmatprep.subr.bf16.mxu0 0
        %1055 = vmatpush1.bf16.msra.mxu0 0
        %1056 = vmatprep.subr.bf16.mxu0 0
        %1057 = vmatpush1.bf16.msra.mxu0 0
        %1058 = vmatprep.mubr.bf16.mxu0 0
        %1059 = vmatmul.mubr.bf16.gmra.mrb[0].mxu0 %v1024
        %v1060 = vpop.f32.mrb[0].mxu0
        %v1061 = vadd.f32 0.0, %v1060
        %v1062 = vpop.f32.mrb[0].mxu0
        %v1063 = vpop.f32.mrb[0].mxu0
        %v1064 = vadd.f32 0.0, %v1063
        %v1065 = vpop.f32.mrb[0].mxu0
        %1066 = vdwg.mxu0
        %v1068 = vsel %vm842, %v934, 0
        %1070 = vmatprep.subr.bf16.mxu0 0
        %1071 = vmatpush1.bf16.msra.mxu0 %v316
        %1072 = vmatprep.subr.bf16.mxu0 0
        %1073 = vmatpush1.bf16.msra.mxu0 0
        %1074 = vmatprep.subr.bf16.mxu0 0
        %1075 = vmatpush1.bf16.msra.mxu0 0
        %1076 = vmatprep.subr.bf16.mxu0 0
        %1077 = vmatpush1.bf16.msra.mxu0 0
        %1078 = vmatprep.subr.bf16.mxu0 0
        %1079 = vmatpush1.bf16.msra.mxu0 0
        %1080 = vmatprep.subr.bf16.mxu0 0
        %1081 = vmatpush1.bf16.msra.mxu0 0
        %1082 = vmatprep.subr.bf16.mxu0 0
        %1083 = vmatpush1.bf16.msra.mxu0 0
        %1084 = vmatprep.subr.bf16.mxu0 0
        %1085 = vmatpush1.bf16.msra.mxu0 0
        %1086 = vmatprep.subr.bf16.mxu0 0
        %1087 = vmatpush1.bf16.msra.mxu0 0
        %1088 = vmatprep.subr.bf16.mxu0 0
        %1089 = vmatpush1.bf16.msra.mxu0 0
        %1090 = vmatprep.subr.bf16.mxu0 0
        %1091 = vmatpush1.bf16.msra.mxu0 0
        %1092 = vmatprep.subr.bf16.mxu0 0
        %1093 = vmatpush1.bf16.msra.mxu0 0
        %1094 = vmatprep.subr.bf16.mxu0 0
        %1095 = vmatpush1.bf16.msra.mxu0 0
        %1096 = vmatprep.subr.bf16.mxu0 0
        %1097 = vmatpush1.bf16.msra.mxu0 0
        %1098 = vmatprep.subr.bf16.mxu0 0
        %1099 = vmatpush1.bf16.msra.mxu0 0
        %1100 = vmatprep.subr.bf16.mxu0 0
        %1101 = vmatpush1.bf16.msra.mxu0 0
        %1102 = vmatprep.mubr.bf16.mxu0 0
        %1103 = vmatmul.mubr.bf16.gmra.mrb[0].mxu0 %v1068
        %v1104 = vpop.f32.mrb[0].mxu0
        %v1105 = vadd.f32 0.0, %v1104
        %v1106 = vpop.f32.mrb[0].mxu0
        %v1107 = vpop.f32.mrb[0].mxu0
        %v1108 = vadd.f32 0.0, %v1107
        %v1109 = vpop.f32.mrb[0].mxu0
        %1110 = vdwg.mxu0
        %v1111 = vpack.c.bf16 %v976, %v973
        %v1112 = vpack.c.bf16 %v1020, %v1017
        %v1113 = vpack.c.bf16 %v1064, %v1061
        %v1114 = vpack.c.bf16 %v1108, %v1105
        %v1115 = vld [vmem:[#allocation7] sm:$0xf]
        %v1116 = vld [vmem:[#allocation7 + $0x4] sm:$0xf]
        %v1117 = vld [vmem:[#allocation7 + $0x8] sm:$0xf]
        %v1118 = vld [vmem:[#allocation7 + $0xc] sm:$0xf]
        %v1119 = vld [vmem:[#allocation7 + $0x10] sm:$0xf]
        %v1120 = vld [vmem:[#allocation7 + $0x14] sm:$0xf]
        %v1121 = vld [vmem:[#allocation7 + $0x18] sm:$0xf]
        %v1122 = vld [vmem:[#allocation7 + $0x1c] sm:$0xf]
        %v1123 = vld [vmem:[#allocation7 + $0x20] sm:$0xf]
        %v1124 = vld [vmem:[#allocation7 + $0x24] sm:$0xf]
        %v1125 = vld [vmem:[#allocation7 + $0x28] sm:$0xf]
        %v1126 = vld [vmem:[#allocation7 + $0x2c] sm:$0xf]
        %v1127 = vld [vmem:[#allocation7 + $0x30] sm:$0xf]
        %v1128 = vld [vmem:[#allocation7 + $0x34] sm:$0xf]
        %v1129 = vld [vmem:[#allocation7 + $0x38] sm:$0xf]
        %v1130 = vld [vmem:[#allocation7 + $0x3c] sm:$0xf]
        %v1131 = vld [vmem:[#allocation7 + $0x40] sm:$0xf]
        %v1132 = vld [vmem:[#allocation7 + $0x44] sm:$0xf]
        %v1133 = vld [vmem:[#allocation7 + $0x48] sm:$0xf]
        %v1134 = vld [vmem:[#allocation7 + $0x4c] sm:$0xf]
        %v1135 = vld [vmem:[#allocation7 + $0x50] sm:$0xf]
        %v1136 = vld [vmem:[#allocation7 + $0x54] sm:$0xf]
        %v1137 = vld [vmem:[#allocation7 + $0x58] sm:$0xf]
        %v1138 = vld [vmem:[#allocation7 + $0x5c] sm:$0xf]
        %v1139 = vld [vmem:[#allocation7 + $0x60] sm:$0xf]
        %v1140 = vld [vmem:[#allocation7 + $0x64] sm:$0xf]
        %v1141 = vld [vmem:[#allocation7 + $0x68] sm:$0xf]
        %v1142 = vld [vmem:[#allocation7 + $0x6c] sm:$0xf]
        %v1143 = vld [vmem:[#allocation7 + $0x70] sm:$0xf]
        %v1144 = vld [vmem:[#allocation7 + $0x74] sm:$0xf]
        %v1145 = vld [vmem:[#allocation7 + $0x78] sm:$0xf]
        %v1146 = vld [vmem:[#allocation7 + $0x7c] sm:$0xf]
        %v1147 = vld [vmem:[#allocation7 + $0x80] sm:$0xf]
        %v1148 = vld [vmem:[#allocation7 + $0x84] sm:$0xf]
        %v1149 = vld [vmem:[#allocation7 + $0x88] sm:$0xf]
        %v1150 = vld [vmem:[#allocation7 + $0x8c] sm:$0xf]
        %v1151 = vld [vmem:[#allocation7 + $0x90] sm:$0xf]
        %v1152 = vld [vmem:[#allocation7 + $0x94] sm:$0xf]
        %v1153 = vld [vmem:[#allocation7 + $0x98] sm:$0xf]
        %v1154 = vld [vmem:[#allocation7 + $0x9c] sm:$0xf]
        %v1155 = vld [vmem:[#allocation7 + $0xa0] sm:$0xf]
        %v1156 = vld [vmem:[#allocation7 + $0xa4] sm:$0xf]
        %v1157 = vld [vmem:[#allocation7 + $0xa8] sm:$0xf]
        %v1158 = vld [vmem:[#allocation7 + $0xac] sm:$0xf]
        %v1159 = vld [vmem:[#allocation7 + $0xb0] sm:$0xf]
        %v1160 = vld [vmem:[#allocation7 + $0xb4] sm:$0xf]
        %v1161 = vld [vmem:[#allocation7 + $0xb8] sm:$0xf]
        %v1162 = vld [vmem:[#allocation7 + $0xbc] sm:$0xf]
        %v1163 = vld [vmem:[#allocation7 + $0xc0] sm:$0xf]
        %v1164 = vld [vmem:[#allocation7 + $0xc4] sm:$0xf]
        %v1165 = vld [vmem:[#allocation7 + $0xc8] sm:$0xf]
        %v1166 = vld [vmem:[#allocation7 + $0xcc] sm:$0xf]
        %v1167 = vld [vmem:[#allocation7 + $0xd0] sm:$0xf]
        %v1168 = vld [vmem:[#allocation7 + $0xd4] sm:$0xf]
        %v1169 = vld [vmem:[#allocation7 + $0xd8] sm:$0xf]
        %v1170 = vld [vmem:[#allocation7 + $0xdc] sm:$0xf]
        %v1171 = vld [vmem:[#allocation7 + $0xe0] sm:$0xf]
        %v1172 = vld [vmem:[#allocation7 + $0xe4] sm:$0xf]
        %v1173 = vld [vmem:[#allocation7 + $0xe8] sm:$0xf]
        %v1174 = vld [vmem:[#allocation7 + $0xec] sm:$0xf]
        %v1175 = vld [vmem:[#allocation7 + $0xf0] sm:$0xf]
        %v1176 = vld [vmem:[#allocation7 + $0xf4] sm:$0xf]
        %v1177 = vld [vmem:[#allocation7 + $0xf8] sm:$0xf]
        %v1178 = vld [vmem:[#allocation7 + $0xfc] sm:$0xf]
        %v1195 = vunpack.c.l.b16 %v1115
        %v1196 = vunpack.c.l.b16 %v1116
        %v1197 = vunpack.c.l.b16 %v1117
        %v1198 = vunpack.c.l.b16 %v1118
        %v1199 = vunpack.c.l.b16 %v1119
        %v1200 = vunpack.c.l.b16 %v1120
        %v1201 = vunpack.c.l.b16 %v1121
        %v1202 = vunpack.c.l.b16 %v1122
        %v1203 = vunpack.c.l.b16 %v1123
        %v1204 = vunpack.c.l.b16 %v1124
        %v1205 = vunpack.c.l.b16 %v1125
        %v1206 = vunpack.c.l.b16 %v1126
        %v1207 = vunpack.c.l.b16 %v1127
        %v1208 = vunpack.c.l.b16 %v1128
        %v1209 = vunpack.c.l.b16 %v1129
        %v1210 = vunpack.c.l.b16 %v1130
        %v1211 = vpack.c.b16 %v1196, %v1195
        %v1212 = vpack.c.b16 %v1198, %v1197
        %v1213 = vpack.c.b16 %v1200, %v1199
        %v1214 = vpack.c.b16 %v1202, %v1201
        %v1215 = vpack.c.b16 %v1204, %v1203
        %v1216 = vpack.c.b16 %v1206, %v1205
        %v1217 = vpack.c.b16 %v1208, %v1207
        %v1218 = vpack.c.b16 %v1210, %v1209
        %1227 = vmatprep.subr.bf16.mxu0 0
        %1228 = vmatpush1.bf16.msra.mxu0 %v1211
        %1229 = vmatprep.subr.bf16.mxu0 0
        %1230 = vmatpush1.bf16.msra.mxu0 %v1212
        %1231 = vmatprep.subr.bf16.mxu0 0
        %1232 = vmatpush1.bf16.msra.mxu0 %v1213
        %1233 = vmatprep.subr.bf16.mxu0 0
        %1234 = vmatpush1.bf16.msra.mxu0 %v1214
        %1235 = vmatprep.subr.bf16.mxu0 0
        %1236 = vmatpush1.bf16.msra.mxu0 %v1215
        %1237 = vmatprep.subr.bf16.mxu0 0
        %1238 = vmatpush1.bf16.msra.mxu0 %v1216
        %1239 = vmatprep.subr.bf16.mxu0 0
        %1240 = vmatpush1.bf16.msra.mxu0 %v1217
        %1241 = vmatprep.subr.bf16.mxu0 0
        %1242 = vmatpush1.bf16.msra.mxu0 %v1218
        %1243 = vmatprep.subr.bf16.mxu0 0
        %1244 = vmatpush1.bf16.msra.mxu0 0
        %1245 = vmatprep.subr.bf16.mxu0 0
        %1246 = vmatpush1.bf16.msra.mxu0 0
        %1247 = vmatprep.subr.bf16.mxu0 0
        %1248 = vmatpush1.bf16.msra.mxu0 0
        %1249 = vmatprep.subr.bf16.mxu0 0
        %1250 = vmatpush1.bf16.msra.mxu0 0
        %1251 = vmatprep.subr.bf16.mxu0 0
        %1252 = vmatpush1.bf16.msra.mxu0 0
        %1253 = vmatprep.subr.bf16.mxu0 0
        %1254 = vmatpush1.bf16.msra.mxu0 0
        %1255 = vmatprep.subr.bf16.mxu0 0
        %1256 = vmatpush1.bf16.msra.mxu0 0
        %1257 = vmatprep.subr.bf16.mxu0 0
        %1258 = vmatpush1.bf16.msra.mxu0 0
        %1259 = vmatprep.mubr.bf16.mxu0 0
        %1260 = vmatmul.mubr.bf16.gmra.mrb[0].mxu0 %v1111
        %v1261 = vpop.f32.mrb[0].mxu0
        %v1262 = vadd.f32 0.0, %v1261
        %v1263 = vpop.f32.mrb[0].mxu0
        %v1264 = vpop.f32.mrb[0].mxu0
        %v1265 = vadd.f32 0.0, %v1264
        %v1266 = vpop.f32.mrb[0].mxu0
        %1267 = vdwg.mxu0
        %v1284 = vunpack.c.l.b16 %v1131
        %v1285 = vunpack.c.l.b16 %v1132
        %v1286 = vunpack.c.l.b16 %v1133
        %v1287 = vunpack.c.l.b16 %v1134
        %v1288 = vunpack.c.l.b16 %v1135
        %v1289 = vunpack.c.l.b16 %v1136
        %v1290 = vunpack.c.l.b16 %v1137
        %v1291 = vunpack.c.l.b16 %v1138
        %v1292 = vunpack.c.l.b16 %v1139
        %v1293 = vunpack.c.l.b16 %v1140
        %v1294 = vunpack.c.l.b16 %v1141
        %v1295 = vunpack.c.l.b16 %v1142
        %v1296 = vunpack.c.l.b16 %v1143
        %v1297 = vunpack.c.l.b16 %v1144
        %v1298 = vunpack.c.l.b16 %v1145
        %v1299 = vunpack.c.l.b16 %v1146
        %v1300 = vpack.c.b16 %v1285, %v1284
        %v1301 = vpack.c.b16 %v1287, %v1286
        %v1302 = vpack.c.b16 %v1289, %v1288
        %v1303 = vpack.c.b16 %v1291, %v1290
        %v1304 = vpack.c.b16 %v1293, %v1292
        %v1305 = vpack.c.b16 %v1295, %v1294
        %v1306 = vpack.c.b16 %v1297, %v1296
        %v1307 = vpack.c.b16 %v1299, %v1298
        %1316 = vmatprep.subr.bf16.mxu0 0
        %1317 = vmatpush1.bf16.msra.mxu0 %v1300
        %1318 = vmatprep.subr.bf16.mxu0 0
        %1319 = vmatpush1.bf16.msra.mxu0 %v1301
        %1320 = vmatprep.subr.bf16.mxu0 0
        %1321 = vmatpush1.bf16.msra.mxu0 %v1302
        %1322 = vmatprep.subr.bf16.mxu0 0
        %1323 = vmatpush1.bf16.msra.mxu0 %v1303
        %1324 = vmatprep.subr.bf16.mxu0 0
        %1325 = vmatpush1.bf16.msra.mxu0 %v1304
        %1326 = vmatprep.subr.bf16.mxu0 0
        %1327 = vmatpush1.bf16.msra.mxu0 %v1305
        %1328 = vmatprep.subr.bf16.mxu0 0
        %1329 = vmatpush1.bf16.msra.mxu0 %v1306
        %1330 = vmatprep.subr.bf16.mxu0 0
        %1331 = vmatpush1.bf16.msra.mxu0 %v1307
        %1332 = vmatprep.subr.bf16.mxu0 0
        %1333 = vmatpush1.bf16.msra.mxu0 0
        %1334 = vmatprep.subr.bf16.mxu0 0
        %1335 = vmatpush1.bf16.msra.mxu0 0
        %1336 = vmatprep.subr.bf16.mxu0 0
        %1337 = vmatpush1.bf16.msra.mxu0 0
        %1338 = vmatprep.subr.bf16.mxu0 0
        %1339 = vmatpush1.bf16.msra.mxu0 0
        %1340 = vmatprep.subr.bf16.mxu0 0
        %1341 = vmatpush1.bf16.msra.mxu0 0
        %1342 = vmatprep.subr.bf16.mxu0 0
        %1343 = vmatpush1.bf16.msra.mxu0 0
        %1344 = vmatprep.subr.bf16.mxu0 0
        %1345 = vmatpush1.bf16.msra.mxu0 0
        %1346 = vmatprep.subr.bf16.mxu0 0
        %1347 = vmatpush1.bf16.msra.mxu0 0
        %1348 = vmatprep.mubr.bf16.mxu0 0
        %1349 = vmatmul.mubr.bf16.gmra.mrb[0].mxu0 %v1112
        %v1350 = vpop.f32.mrb[0].mxu0
        %v1351 = vadd.f32 0.0, %v1350
        %v1352 = vpop.f32.mrb[0].mxu0
        %v1353 = vpop.f32.mrb[0].mxu0
        %v1354 = vadd.f32 0.0, %v1353
        %v1355 = vpop.f32.mrb[0].mxu0
        %1356 = vdwg.mxu0
        %v1373 = vunpack.c.l.b16 %v1147
        %v1374 = vunpack.c.l.b16 %v1148
        %v1375 = vunpack.c.l.b16 %v1149
        %v1376 = vunpack.c.l.b16 %v1150
        %v1377 = vunpack.c.l.b16 %v1151
        %v1378 = vunpack.c.l.b16 %v1152
        %v1379 = vunpack.c.l.b16 %v1153
        %v1380 = vunpack.c.l.b16 %v1154
        %v1381 = vunpack.c.l.b16 %v1155
        %v1382 = vunpack.c.l.b16 %v1156
        %v1383 = vunpack.c.l.b16 %v1157
        %v1384 = vunpack.c.l.b16 %v1158
        %v1385 = vunpack.c.l.b16 %v1159
        %v1386 = vunpack.c.l.b16 %v1160
        %v1387 = vunpack.c.l.b16 %v1161
        %v1388 = vunpack.c.l.b16 %v1162
        %v1389 = vpack.c.b16 %v1374, %v1373
        %v1390 = vpack.c.b16 %v1376, %v1375
        %v1391 = vpack.c.b16 %v1378, %v1377
        %v1392 = vpack.c.b16 %v1380, %v1379
        %v1393 = vpack.c.b16 %v1382, %v1381
        %v1394 = vpack.c.b16 %v1384, %v1383
        %v1395 = vpack.c.b16 %v1386, %v1385
        %v1396 = vpack.c.b16 %v1388, %v1387
        %1405 = vmatprep.subr.bf16.mxu0 0
        %1406 = vmatpush1.bf16.msra.mxu0 %v1389
        %1407 = vmatprep.subr.bf16.mxu0 0
        %1408 = vmatpush1.bf16.msra.mxu0 %v1390
        %1409 = vmatprep.subr.bf16.mxu0 0
        %1410 = vmatpush1.bf16.msra.mxu0 %v1391
        %1411 = vmatprep.subr.bf16.mxu0 0
        %1412 = vmatpush1.bf16.msra.mxu0 %v1392
        %1413 = vmatprep.subr.bf16.mxu0 0
        %1414 = vmatpush1.bf16.msra.mxu0 %v1393
        %1415 = vmatprep.subr.bf16.mxu0 0
        %1416 = vmatpush1.bf16.msra.mxu0 %v1394
        %1417 = vmatprep.subr.bf16.mxu0 0
        %1418 = vmatpush1.bf16.msra.mxu0 %v1395
        %1419 = vmatprep.subr.bf16.mxu0 0
        %1420 = vmatpush1.bf16.msra.mxu0 %v1396
        %1421 = vmatprep.subr.bf16.mxu0 0
        %1422 = vmatpush1.bf16.msra.mxu0 0
        %1423 = vmatprep.subr.bf16.mxu0 0
        %1424 = vmatpush1.bf16.msra.mxu0 0
        %1425 = vmatprep.subr.bf16.mxu0 0
        %1426 = vmatpush1.bf16.msra.mxu0 0
        %1427 = vmatprep.subr.bf16.mxu0 0
        %1428 = vmatpush1.bf16.msra.mxu0 0
        %1429 = vmatprep.subr.bf16.mxu0 0
        %1430 = vmatpush1.bf16.msra.mxu0 0
        %1431 = vmatprep.subr.bf16.mxu0 0
        %1432 = vmatpush1.bf16.msra.mxu0 0
        %1433 = vmatprep.subr.bf16.mxu0 0
        %1434 = vmatpush1.bf16.msra.mxu0 0
        %1435 = vmatprep.subr.bf16.mxu0 0
        %1436 = vmatpush1.bf16.msra.mxu0 0
        %1437 = vmatprep.mubr.bf16.mxu0 0
        %1438 = vmatmul.mubr.bf16.gmra.mrb[0].mxu0 %v1113
        %v1439 = vpop.f32.mrb[0].mxu0
        %v1440 = vadd.f32 0.0, %v1439
        %v1441 = vpop.f32.mrb[0].mxu0
        %v1442 = vpop.f32.mrb[0].mxu0
        %v1443 = vadd.f32 0.0, %v1442
        %v1444 = vpop.f32.mrb[0].mxu0
        %1445 = vdwg.mxu0
        %v1462 = vunpack.c.l.b16 %v1163
        %v1463 = vunpack.c.l.b16 %v1164
        %v1464 = vunpack.c.l.b16 %v1165
        %v1465 = vunpack.c.l.b16 %v1166
        %v1466 = vunpack.c.l.b16 %v1167
        %v1467 = vunpack.c.l.b16 %v1168
        %v1468 = vunpack.c.l.b16 %v1169
        %v1469 = vunpack.c.l.b16 %v1170
        %v1470 = vunpack.c.l.b16 %v1171
        %v1471 = vunpack.c.l.b16 %v1172
        %v1472 = vunpack.c.l.b16 %v1173
        %v1473 = vunpack.c.l.b16 %v1174
        %v1474 = vunpack.c.l.b16 %v1175
        %v1475 = vunpack.c.l.b16 %v1176
        %v1476 = vunpack.c.l.b16 %v1177
        %v1477 = vunpack.c.l.b16 %v1178
        %v1478 = vpack.c.b16 %v1463, %v1462
        %v1479 = vpack.c.b16 %v1465, %v1464
        %v1480 = vpack.c.b16 %v1467, %v1466
        %v1481 = vpack.c.b16 %v1469, %v1468
        %v1482 = vpack.c.b16 %v1471, %v1470
        %v1483 = vpack.c.b16 %v1473, %v1472
        %v1484 = vpack.c.b16 %v1475, %v1474
        %v1485 = vpack.c.b16 %v1477, %v1476
        %1494 = vmatprep.subr.bf16.mxu0 0
        %1495 = vmatpush1.bf16.msra.mxu0 %v1478
        %1496 = vmatprep.subr.bf16.mxu0 0
        %1497 = vmatpush1.bf16.msra.mxu0 %v1479
        %1498 = vmatprep.subr.bf16.mxu0 0
        %1499 = vmatpush1.bf16.msra.mxu0 %v1480
        %1500 = vmatprep.subr.bf16.mxu0 0
        %1501 = vmatpush1.bf16.msra.mxu0 %v1481
        %1502 = vmatprep.subr.bf16.mxu0 0
        %1503 = vmatpush1.bf16.msra.mxu0 %v1482
        %1504 = vmatprep.subr.bf16.mxu0 0
        %1505 = vmatpush1.bf16.msra.mxu0 %v1483
        %1506 = vmatprep.subr.bf16.mxu0 0
        %1507 = vmatpush1.bf16.msra.mxu0 %v1484
        %1508 = vmatprep.subr.bf16.mxu0 0
        %1509 = vmatpush1.bf16.msra.mxu0 %v1485
        %1510 = vmatprep.subr.bf16.mxu0 0
        %1511 = vmatpush1.bf16.msra.mxu0 0
        %1512 = vmatprep.subr.bf16.mxu0 0
        %1513 = vmatpush1.bf16.msra.mxu0 0
        %1514 = vmatprep.subr.bf16.mxu0 0
        %1515 = vmatpush1.bf16.msra.mxu0 0
        %1516 = vmatprep.subr.bf16.mxu0 0
        %1517 = vmatpush1.bf16.msra.mxu0 0
        %1518 = vmatprep.subr.bf16.mxu0 0
        %1519 = vmatpush1.bf16.msra.mxu0 0
        %1520 = vmatprep.subr.bf16.mxu0 0
        %1521 = vmatpush1.bf16.msra.mxu0 0
        %1522 = vmatprep.subr.bf16.mxu0 0
        %1523 = vmatpush1.bf16.msra.mxu0 0
        %1524 = vmatprep.subr.bf16.mxu0 0
        %1525 = vmatpush1.bf16.msra.mxu0 0
        %1526 = vmatprep.mubr.bf16.mxu0 0
        %1527 = vmatmul.mubr.bf16.gmra.mrb[0].mxu0 %v1114
        %v1528 = vpop.f32.mrb[0].mxu0
        %v1529 = vadd.f32 0.0, %v1528
        %v1530 = vpop.f32.mrb[0].mxu0
        %v1531 = vpop.f32.mrb[0].mxu0
        %v1532 = vadd.f32 0.0, %v1531
        %v1533 = vpop.f32.mrb[0].mxu0
        %1534 = vdwg.mxu0
        %v1535 = vadd.f32 %v1262, %v1351
        %v1536 = vadd.f32 %v1535, %v1440
        %v1537 = vadd.f32 %v1536, %v1529
        %v1538 = vadd.f32 %v1265, %v1354
        %v1539 = vadd.f32 %v1538, %v1443
        %v1540 = vadd.f32 %v1539, %v1532
        %v1541 = vld [vmem:[%s3] sm:$0x1]
        %v1543 = vlaneseq
        %v1544 = vshrl.u32 %v1543, 7
        %v1545 = vsub.s32 0, %v1544
        %v1546 = vrot.slane %v1541, %v1545
        %v1548 = vadd.f32 %v1537, %v1546
        %v1549 = vadd.f32 %v1540, %v1546
        %v1550 = vpack.c.bf16 %v1549, %v1548
        %v1552 = vunpack.c.l.b16 %v1550
        %v1553 = vunpack.c.h.b16 %v1550
        %v1554 = vpack.c.b16 %v1552, %v1552
        %v1555 = vpack.c.b16 %v1553, %v1553
        %1558 = vst [vmem:[%s244] sm:$0xf] %v1554
        %1559 = vst [vmem:[%s244 + $0x4] sm:$0xf] %v1555
        %s1560 = sand.u32 %s119, 1
        %s1561 = scalar_lea.sflag [#allocation4], %s1560
        %s1562 = sand.u32 %s119, 1
        %s1563 = smul.addr %s1562, 8
        %s1564 = scalar_lea.vmem [#allocation8], %s1563
        // Predicated region
        $region49: #{tpu_custom_call.1} parent=35 // pred_check
          %p1565 = pneg %p129
        $region50: #{tpu_custom_call.1} parent=35 // pred_check_branch
          %1567 = sbr.rel (%p1565) target = $region52
        $region51: #{tpu_custom_call.1} parent=35 // pred_region
          %s1569 = ssub.s32 128, 128
          %1570 = vsyncadd %s1561, %s1569
          %s1571 = smul.addr %s22, 2
          %s1572 = smul.addr %s1571, 64
          %s1573 = scalar_lea.hbm %s4, %s1572
          %s1574 = sshll.u32 %s1564, 4
          %s1575 = int_to_ptr.vmem [resolvable:$true] %s1574
          %1580 = dma.vmem_to_hbm [thread:$0]  %s1575, 128, %s1573, %s1561, 64, 64, 4
        $region52: #{tpu_custom_call.1} parent=35 // pred_fallthru
          _
      $region36: #{tpu_custom_call.1} parent=5 // pred_fallthru
        _
      %p1581 = scmp.le.s32.totalorder 2, %s17
      // Predicated region
      $region53: #{tpu_custom_call.1} parent=5 // pred_check
        %p1582 = pneg %p1581
      $region54: #{tpu_custom_call.1} parent=5 // pred_check_branch
        %1584 = sbr.rel (%p1582) target = $region56
      $region55: #{tpu_custom_call.1} parent=5 // pred_region
        %s1585 = ssub.s32 %s17, 2
        // Predicated region
        $region57: #{tpu_custom_call.1} parent=55 // pred_check
          %p1586 = pneg %p135
        $region58: #{tpu_custom_call.1} parent=55 // pred_check_branch
          %1588 = sbr.rel (%p1586) target = $region60
        $region59: #{tpu_custom_call.1} parent=55 // pred_region
          %s1589 = sand.u32 %s120, 1
          %s1590 = scalar_lea.sflag [#allocation4], %s1589
          %s1591 = sand.u32 %s120, 1
          %s1592 = smul.addr %s1591, 8
          %s1593 = scalar_lea.vmem [#allocation8], %s1592
          %1594 = dma.done %s1590, 128
        $region60: #{tpu_custom_call.1} parent=55 // pred_fallthru
          _
      $region56: #{tpu_custom_call.1} parent=5 // pred_fallthru
        _
    $region6: #{tpu_custom_call.1} parent=1 // loop_footer
      %s21 = sadd.s32 1, %s17
    $region7: #{tpu_custom_call.1} parent=1 // loop_footer_branch
      %16 = sbr.rel target = $region3
    $region8: #{tpu_custom_call.1} parent=1 // loop_exit
      _
    %1595 = vsyncpa [#allocation3], 1
    %s1596 = scalar_lea.sflag [#allocation3], 1
    %1597 = vsyncpa %s1596, 1
    %1598 = vsyncpa [#allocation6], 1
    %1599 = vsyncpa [#allocation4], 1
    %s1600 = scalar_lea.sflag [#allocation4], 1
    %1601 = vsyncpa %s1600, 1

</llo_original>
